<compile_context>
chip_gen: v5e
topology: v5e:2x2
jax: 0.10.0
libtpu: 0.0.40
codegen_flags: <defaults>
</compile_context>

<pallas_src>
import functools
import math

import jax
import jax.numpy as jnp
from jax import lax
from jax.experimental import pallas as pl
from jax.experimental.pallas import tpu as pltpu


_NEG_INF = -1e30


def _pick_tile(dim, candidates):
    for c in candidates:
        if dim % c == 0:
            return c
    return dim


# ----------------------------------------------------------------------------
# Pallas kernel: linear layer  y = x @ W^T + b   (PyTorch nn.Linear semantics)
# ----------------------------------------------------------------------------
def _linear_kernel(x_ref, w_ref, b_ref, o_ref, acc_ref):
    k = pl.program_id(2)

    @pl.when(k == 0)
    def _():
        acc_ref[...] = jnp.zeros_like(acc_ref)

    acc_ref[...] += lax.dot_general(
        x_ref[...], w_ref[...], (((1,), (1,)), ((), ())),
        preferred_element_type=jnp.float32)

    @pl.when(k == pl.num_programs(2) - 1)
    def _():
        o_ref[...] = (acc_ref[...] + b_ref[...].astype(jnp.float32)).astype(o_ref.dtype)


def pallas_linear(x, w, b):
    M, K = x.shape
    N = w.shape[0]
    tm = _pick_tile(M, (256, 128, 64, 32, 16, 8))
    tn = _pick_tile(N, (256, 128))
    tk = _pick_tile(K, (512, 256, 128))
    grid = (M // tm, N // tn, K // tk)
    return pl.pallas_call(
        _linear_kernel,
        out_shape=jax.ShapeDtypeStruct((M, N), x.dtype),
        grid_spec=pltpu.PrefetchScalarGridSpec(
            num_scalar_prefetch=0,
            grid=grid,
            in_specs=[
                pl.BlockSpec((tm, tk), lambda i, j, k: (i, k)),
                pl.BlockSpec((tn, tk), lambda i, j, k: (j, k)),
                pl.BlockSpec((1, tn), lambda i, j, k: (0, j)),
            ],
            out_specs=pl.BlockSpec((tm, tn), lambda i, j, k: (i, j)),
            scratch_shapes=[pltpu.VMEM((tm, tn), jnp.float32)],
        ),
        compiler_params=pltpu.CompilerParams(
            dimension_semantics=("parallel", "parallel", "arbitrary"),
            vmem_limit_bytes=64 * 1024 * 1024),
    )(x, w, b.reshape(1, N))


# ----------------------------------------------------------------------------
# xPos tables (rotary-embedding-torch, use_xpos=True) and helpers
# ----------------------------------------------------------------------------
def _xpos_tables(seq_len, seq_pad, dh, dhp, theta, scale_base):
    dim_t = jnp.arange(0, dh, 2, dtype=jnp.float32)
    inv_freq = 1.0 / (theta ** (dim_t / dh))                              # (dh/2,)
    t = jnp.arange(seq_pad, dtype=jnp.float32)                            # (S_pad,)
    freqs = jnp.repeat(t[:, None] * inv_freq[None, :], 2, axis=-1)        # (S_pad, dh) interleaved

    power = (t - (seq_len // 2)) / scale_base                             # real seq length offset
    base = (dim_t + 0.4 * dh) / (1.4 * dh)                                # (dh/2,)
    scale = base[None, :] ** power[:, None]                               # (S_pad, dh/2)
    scale = jnp.concatenate([scale, scale], axis=-1)                      # (S_pad, dh) (library behavior)

    cos = jnp.cos(freqs)
    sin = jnp.sin(freqs)
    cos_q, sin_q = cos * scale, sin * scale
    cos_k, sin_k = cos / scale, sin / scale

    if dhp > dh:
        pad = ((0, 0), (0, dhp - dh))
        cos_q = jnp.pad(cos_q, pad, constant_values=1.0)
        cos_k = jnp.pad(cos_k, pad, constant_values=1.0)
        sin_q = jnp.pad(sin_q, pad)
        sin_k = jnp.pad(sin_k, pad)
    return cos_q, sin_q, cos_k, sin_k


def _apply_xpos_jax(x, cos, sin, num_heads, dhp):
    # x: (B, S, H*Dhp); cos/sin: (S, Dhp).  Pure elementwise pre-pass (XLA fuses it).
    B, S, HD = x.shape
    x4 = x.reshape(B, S, num_heads, dhp).astype(jnp.float32)
    x1 = x4[..., 0::2]
    x2 = x4[..., 1::2]
    rot = jnp.stack([-x2, x1], axis=-1).reshape(x4.shape)
    out = x4 * cos[None, :, None, :] + rot * sin[None, :, None, :]
    return out.astype(x.dtype).reshape(B, S, HD)


def _rotate_pairs(x):
    # Interleaved rotate_half: out[..., 2i] = -x[..., 2i+1]; out[..., 2i+1] = x[..., 2i].
    d = x.shape[-1]
    ax = x.ndim - 1
    nxt = pltpu.roll(x, shift=d - 1, axis=ax)   # nxt[j] = x[j+1]
    prv = pltpu.roll(x, shift=1, axis=ax)       # prv[j] = x[j-1]
    lane = lax.broadcasted_iota(jnp.int32, x.shape, ax)
    return jnp.where(lane % 2 == 0, -nxt, prv)


# ----------------------------------------------------------------------------
# Pallas kernel: tiled flash attention with fused xPos on Q
# q, k, v: (B, S_pad, H*Dhp) with heads folded into the last axis.
# ----------------------------------------------------------------------------
def _flash_kernel(q_ref, k_ref, v_ref, cq_ref, sq_ref, o_ref,
                  qrot_sc, m_sc, l_sc, acc_sc,
                  *, sm_scale, block_q, block_k, causal, kv_len, padded):
    qi = pl.program_id(2)
    ki = pl.program_id(3)

    @pl.when(ki == 0)
    def _init():
        q = q_ref[0].astype(jnp.float32)
        q_rot = q * cq_ref[...] + _rotate_pairs(q) * sq_ref[...]
        qrot_sc[...] = q_rot.astype(qrot_sc.dtype)
        m_sc[...] = jnp.full_like(m_sc, _NEG_INF)
        l_sc[...] = jnp.zeros_like(l_sc)
        acc_sc[...] = jnp.zeros_like(acc_sc)

    def process_block():
        k = k_ref[0]                                           # native (bf16) MXU operand
        s = lax.dot_general(qrot_sc[...], k, (((1,), (1,)), ((), ())),
                            preferred_element_type=jnp.float32) * sm_scale

        mask = None
        if causal:
            row = qi * block_q + lax.broadcasted_iota(jnp.int32, (block_q, block_k), 0)
            col = ki * block_k + lax.broadcasted_iota(jnp.int32, (block_q, block_k), 1)
            mask = row >= col
        elif padded:
            col = ki * block_k + lax.broadcasted_iota(jnp.int32, (block_q, block_k), 1)
            mask = col < kv_len
        if mask is not None:
            s = jnp.where(mask, s, _NEG_INF)

        m_prev = m_sc[...]
        m_new = jnp.maximum(m_prev, s.max(axis=-1, keepdims=True))
        alpha = jnp.exp(m_prev - m_new)
        # Masked entries underflow to exactly 0: the first kv block of every row
        # always contains a live column under this schedule, so no second where.
        p = jnp.exp(s - m_new)
        l_sc[...] = alpha * l_sc[...] + p.sum(axis=-1, keepdims=True)
        acc_sc[...] = alpha * acc_sc[...] + jnp.dot(
            p.astype(v_ref.dtype), v_ref[0], preferred_element_type=jnp.float32)
        m_sc[...] = m_new

    if causal:
        # Skip fully-masked (upper-triangular) kv blocks: ~2x fewer MXU flops + DMA.
        @pl.when(qi * block_q + block_q - 1 >= ki * block_k)
        def _():
            process_block()
    else:
        process_block()

    @pl.when(ki == pl.num_programs(3) - 1)
    def _finalize():
        inv_l = pl.reciprocal(l_sc[...], approx=True)
        o_ref[0] = (acc_sc[...] * inv_l).astype(o_ref.dtype)


def xpos_flash_attention(q, k, v, *, num_heads, head_dim, head_dim_padded,
                         causal=True, theta=10000.0, scale_base=512.0):
    B, S, HD = q.shape
    H, Dhp = num_heads, head_dim_padded
    assert HD == H * Dhp

    s_pad = ((S + 7) // 8) * 8
    # TODO(synk): sweep the block size per chip (v6e can push 512; 256 is a safe
    # cross-generation default for v7x's 64 MiB VMEM).
    blk = _pick_tile(s_pad, (256, 128, 64, 32, 16, 8))

    cos_q, sin_q, cos_k, sin_k = _xpos_tables(S, s_pad, head_dim, Dhp, theta, scale_base)

    if s_pad != S:
        pad = ((0, 0), (0, s_pad - S), (0, 0))
        q = jnp.pad(q, pad)
        k = jnp.pad(k, pad)
        v = jnp.pad(v, pad)

    # K rotation (xPos with scale**-1) as a single pre-pass; Q rotation is fused in-kernel.
    k = _apply_xpos_jax(k, cos_k, sin_k, H, Dhp)

    grid = (B, H, s_pad // blk, s_pad // blk)
    kernel = functools.partial(
        _flash_kernel,
        sm_scale=1.0 / math.sqrt(head_dim),
        block_q=blk, block_k=blk, causal=causal,
        kv_len=S, padded=(s_pad != S))

    out = pl.pallas_call(
        kernel,
        out_shape=jax.ShapeDtypeStruct((B, s_pad, H * Dhp), q.dtype),
        grid_spec=pltpu.PrefetchScalarGridSpec(
            num_scalar_prefetch=0,
            grid=grid,
            in_specs=[
                pl.BlockSpec((1, blk, Dhp), lambda b, h, qi, ki: (b, qi, h)),
                pl.BlockSpec((1, blk, Dhp), lambda b, h, qi, ki: (b, ki, h)),
                pl.BlockSpec((1, blk, Dhp), lambda b, h, qi, ki: (b, ki, h)),
                pl.BlockSpec((blk, Dhp), lambda b, h, qi, ki: (qi, 0)),
                pl.BlockSpec((blk, Dhp), lambda b, h, qi, ki: (qi, 0)),
            ],
            out_specs=pl.BlockSpec((1, blk, Dhp), lambda b, h, qi, ki: (b, qi, h)),
            scratch_shapes=[
                pltpu.VMEM((blk, Dhp), q.dtype),      # rotated q tile
                pltpu.VMEM((blk, 1), jnp.float32),    # running max
                pltpu.VMEM((blk, 1), jnp.float32),    # running denominator
                pltpu.VMEM((blk, Dhp), jnp.float32),  # output accumulator
            ],
        ),
        compiler_params=pltpu.CompilerParams(
            dimension_semantics=("parallel", "parallel", "parallel", "arbitrary"),
            vmem_limit_bytes=64 * 1024 * 1024),
    )(q, k, v, cos_q, sin_q)

    return out[:, :S] if s_pad != S else out


# ----------------------------------------------------------------------------
# Weight padding: make the per-head feature dim lane-dense (multiple of 128)
# by zero-padding the projection weights/biases (zero cost at runtime).
# ----------------------------------------------------------------------------
def _pad_head_proj(w, b, num_heads, dh, dhp):
    # w: (H*Dh, in), b: (H*Dh,)
    if dhp == dh:
        return w, b
    in_f = w.shape[1]
    w = jnp.pad(w.reshape(num_heads, dh, in_f), ((0, 0), (0, dhp - dh), (0, 0)))
    b = jnp.pad(b.reshape(num_heads, dh), ((0, 0), (0, dhp - dh)))
    return w.reshape(num_heads * dhp, in_f), b.reshape(num_heads * dhp)


def _pad_out_proj(w, num_heads, dh, dhp):
    # w: (out, H*Dh) -> (out, H*Dhp); padded head dims are exactly zero in `inter`.
    if dhp == dh:
        return w
    out_f = w.shape[0]
    w = jnp.pad(w.reshape(out_f, num_heads, dh), ((0, 0), (0, 0), (0, dhp - dh)))
    return w.reshape(out_f, num_heads * dhp)


# ----------------------------------------------------------------------------
# Module wrapper
# ----------------------------------------------------------------------------
def init_params(key, dim, num_heads, dtype=jnp.float32):
    Dh = dim // num_heads
    inner = num_heads * Dh

    def linear_init(k, out_f, in_f):
        kw, kb = jax.random.split(k)
        bound = 1.0 / math.sqrt(in_f)
        w = jax.random.uniform(kw, (out_f, in_f), jnp.float32, -bound, bound).astype(dtype)
        b = jax.random.uniform(kb, (out_f,), jnp.float32, -bound, bound).astype(dtype)
        return w, b

    kq, kk, kv, km = jax.random.split(key, 4)
    return {
        "q": linear_init(kq, inner, dim),
        "k": linear_init(kk, inner, dim),
        "v": linear_init(kv, inner, dim),
        "multi_mad": linear_init(km, dim, inner),
    }


def xpos_attention_flash_forward(params, x, *, num_heads, mask=True,
                                 theta=10000.0, scale_base=512.0):
    B, S, dim = x.shape
    Dh = dim // num_heads
    assert Dh % 2 == 0, "xPos rotary requires an even head dimension"
    Dhp = ((Dh + 127) // 128) * 128   # lane-dense padded head dim

    # TODO(synk): weight padding could be done once outside the jitted forward.
    wq, bq = _pad_head_proj(*params["q"], num_heads, Dh, Dhp)
    wk, bk = _pad_head_proj(*params["k"], num_heads, Dh, Dhp)
    wv, bv = _pad_head_proj(*params["v"], num_heads, Dh, Dhp)
    wo, bo = params["multi_mad"]
    wo = _pad_out_proj(wo, num_heads, Dh, Dhp)

    xf = x.reshape(B * S, dim)
    # Reproduce the reference module's (q, v, k) ordering:
    #   queries <- q(input), keys <- v(input), values <- k(input)
    queries = pallas_linear(xf, wq, bq).reshape(B, S, num_heads * Dhp)
    keys = pallas_linear(xf, wv, bv).reshape(B, S, num_heads * Dhp)
    values = pallas_linear(xf, wk, bk).reshape(B, S, num_heads * Dhp)

    inter = xpos_flash_attention(
        queries, keys, values,
        num_heads=num_heads, head_dim=Dh, head_dim_padded=Dhp,
        causal=mask, theta=theta, scale_base=scale_base)

    out = pallas_linear(inter.reshape(B * S, num_heads * Dhp), wo, bo)
    return out.reshape(B, S, dim)


if __name__ == "__main__":
    batch, seq, dim, num_heads = 2, 8, 32, 4
    dtype = jnp.bfloat16   # flash_attn requires half precision; bf16 keeps the MXU on its fast path

    key = jax.random.PRNGKey(0)
    k_in, k_par = jax.random.split(key)
    x = jax.random.normal(k_in, (batch, seq, dim), jnp.float32).astype(dtype)
    params = init_params(k_par, dim, num_heads, dtype=dtype)

    fwd = jax.jit(functools.partial(xpos_attention_flash_forward,
                                    num_heads=num_heads, mask=True))
    out = fwd(params, x)
    out = jax.block_until_ready(out)

    assert out.shape == (batch, seq, dim)
    assert bool(jnp.all(jnp.isfinite(out.astype(jnp.float32))))
    print("KERNEL_OK")
</pallas_src>

<mosaic_0001>
module attributes {stable_mosaic.version = 11 : i64} {
  func.func @_linear_kernel(%arg0: i32, %arg1: i32, %arg2: i32, %arg3: memref<16x32xbf16, #tpu.memory_space<vmem>>, %arg4: memref<256x32xbf16, #tpu.memory_space<vmem>>, %arg5: memref<1x256xbf16, #tpu.memory_space<vmem>>, %arg6: memref<16x256xbf16, #tpu.memory_space<vmem>>, %arg7: memref<16x256xf32, #tpu.memory_space<vmem>>) attributes {dimension_semantics = [#tpu.dimension_semantics<parallel>, #tpu.dimension_semantics<parallel>, #tpu.dimension_semantics<arbitrary>], iteration_bounds = array<i64: 1, 2, 1>, scalar_prefetch = 0 : i64, scratch_operands = 1 : i64, tpu.core_type = #tpu.core_type<tc>, window_params = [{transform_indices = @transform_0, window_bounds = array<i64: 16, 32>}, {transform_indices = @transform_1, window_bounds = array<i64: 256, 32>}, {transform_indices = @transform_2, window_bounds = array<i64: 1, 256>}, {transform_indices = @transform_3, window_bounds = array<i64: 16, 256>}]} {
    %c0_i32 = arith.constant 0 : i32
    %0 = arith.cmpi eq, %arg2, %c0_i32 : i32
    %1 = arith.extui %0 : i1 to i32
    %c0_i32_0 = arith.constant 0 : i32
    %2 = arith.cmpi ne, %1, %c0_i32_0 : i32
    scf.if %2 {
      %cst_10 = arith.constant 0.000000e+00 : f32
      %12 = vector.broadcast %cst_10 : f32 to vector<16x256xf32>
      %c0_11 = arith.constant 0 : index
      %c0_12 = arith.constant 0 : index
      %13 = vector.load %arg7[%c0_11, %c0_12] : memref<16x256xf32, #tpu.memory_space<vmem>>, vector<16x256xf32>
      tpu.vector_store %arg7[%c0_11, %c0_12], %12 {strides = array<i32>} : memref<16x256xf32, #tpu.memory_space<vmem>>, vector<16x256xf32>,
    } else {
    }
    %c0 = arith.constant 0 : index
    %c0_1 = arith.constant 0 : index
    %3 = vector.load %arg7[%c0, %c0_1] : memref<16x256xf32, #tpu.memory_space<vmem>>, vector<16x256xf32>
    %c0_2 = arith.constant 0 : index
    %c0_3 = arith.constant 0 : index
    %4 = vector.load %arg3[%c0_2, %c0_3] : memref<16x32xbf16, #tpu.memory_space<vmem>>, vector<16x32xbf16>
    %c0_4 = arith.constant 0 : index
    %c0_5 = arith.constant 0 : index
    %5 = vector.load %arg4[%c0_4, %c0_5] : memref<256x32xbf16, #tpu.memory_space<vmem>>, vector<256x32xbf16>
    %cst = arith.constant dense<0.000000e+00> : vector<16x256xf32>
    %6 = tpu.matmul %4, %5, %cst {dimension_numbers = #tpu.dot_dimension_numbers<[1], [1], [0], [0], [0, 0, 1, 0], [], []>} : vector<16x32xbf16>, vector<256x32xbf16>, vector<16x256xf32> -> vector<16x256xf32>
    %7 = arith.addf %3, %6 : vector<16x256xf32>
    %c0_6 = arith.constant 0 : index
    %c0_7 = arith.constant 0 : index
    %8 = vector.load %arg7[%c0_6, %c0_7] : memref<16x256xf32, #tpu.memory_space<vmem>>, vector<16x256xf32>
    tpu.vector_store %arg7[%c0_6, %c0_7], %7 {strides = array<i32>} : memref<16x256xf32, #tpu.memory_space<vmem>>, vector<16x256xf32>,
    %c0_i32_8 = arith.constant 0 : i32
    %9 = arith.cmpi eq, %arg2, %c0_i32_8 : i32
    %10 = arith.extui %9 : i1 to i32
    %c0_i32_9 = arith.constant 0 : i32
    %11 = arith.cmpi ne, %10, %c0_i32_9 : i32
    scf.if %11 {
      %c0_10 = arith.constant 0 : index
      %c0_11 = arith.constant 0 : index
      %12 = vector.load %arg7[%c0_10, %c0_11] : memref<16x256xf32, #tpu.memory_space<vmem>>, vector<16x256xf32>
      %c0_12 = arith.constant 0 : index
      %c0_13 = arith.constant 0 : index
      %13 = vector.load %arg5[%c0_12, %c0_13] : memref<1x256xbf16, #tpu.memory_space<vmem>>, vector<1x256xbf16>
      %14 = arith.extf %13 : vector<1x256xbf16> to vector<1x256xf32>
      %15 = vector.broadcast %14 : vector<1x256xf32> to vector<16x256xf32>
      %16 = arith.addf %12, %15 : vector<16x256xf32>
      %17 = arith.truncf %16 : vector<16x256xf32> to vector<16x256xbf16>
      %c0_14 = arith.constant 0 : index
      %c0_15 = arith.constant 0 : index
      %18 = vector.load %arg6[%c0_14, %c0_15] : memref<16x256xbf16, #tpu.memory_space<vmem>>, vector<16x256xbf16>
      tpu.vector_store %arg6[%c0_14, %c0_15], %17 {strides = array<i32>} : memref<16x256xbf16, #tpu.memory_space<vmem>>, vector<16x256xbf16>,
    } else {
    }
    return
  }
  func.func @transform_0(%arg0: i32, %arg1: i32, %arg2: i32) -> (i32, i32) {
    %c0_i32 = arith.constant 0 : i32
    return %arg0, %arg2 : i32, i32
  }
  func.func @transform_1(%arg0: i32, %arg1: i32, %arg2: i32) -> (i32, i32) {
    %c0_i32 = arith.constant 0 : i32
    return %arg1, %arg2 : i32, i32
  }
  func.func @transform_2(%arg0: i32, %arg1: i32, %arg2: i32) -> (i32, i32) {
    %c0_i32 = arith.constant 0 : i32
    %c0_i32_0 = arith.constant 0 : i32
    return %c0_i32, %arg1 : i32, i32
  }
  func.func @transform_3(%arg0: i32, %arg1: i32, %arg2: i32) -> (i32, i32) {
    %c0_i32 = arith.constant 0 : i32
    return %arg0, %arg1 : i32, i32
  }
}

module attributes {stable_mosaic.version = 11 : i64} {
  func.func @_linear_kernel(%arg0: i32, %arg1: i32, %arg2: i32, %arg3: memref<16x512xbf16, #tpu.memory_space<vmem>>, %arg4: memref<32x512xbf16, #tpu.memory_space<vmem>>, %arg5: memref<1x32xbf16, #tpu.memory_space<vmem>>, %arg6: memref<16x32xbf16, #tpu.memory_space<vmem>>, %arg7: memref<16x32xf32, #tpu.memory_space<vmem>>) attributes {dimension_semantics = [#tpu.dimension_semantics<parallel>, #tpu.dimension_semantics<parallel>, #tpu.dimension_semantics<arbitrary>], iteration_bounds = array<i64: 1, 1, 1>, scalar_prefetch = 0 : i64, scratch_operands = 1 : i64, tpu.core_type = #tpu.core_type<tc>, window_params = [{transform_indices = @transform_0, window_bounds = array<i64: 16, 512>}, {transform_indices = @transform_1, window_bounds = array<i64: 32, 512>}, {transform_indices = @transform_2, window_bounds = array<i64: 1, 32>}, {transform_indices = @transform_3, window_bounds = array<i64: 16, 32>}]} {
    %c0_i32 = arith.constant 0 : i32
    %0 = arith.cmpi eq, %arg2, %c0_i32 : i32
    %1 = arith.extui %0 : i1 to i32
    %c0_i32_0 = arith.constant 0 : i32
    %2 = arith.cmpi ne, %1, %c0_i32_0 : i32
    scf.if %2 {
      %cst_10 = arith.constant 0.000000e+00 : f32
      %12 = vector.broadcast %cst_10 : f32 to vector<16x32xf32>
      %c0_11 = arith.constant 0 : index
      %c0_12 = arith.constant 0 : index
      %13 = vector.load %arg7[%c0_11, %c0_12] : memref<16x32xf32, #tpu.memory_space<vmem>>, vector<16x32xf32>
      tpu.vector_store %arg7[%c0_11, %c0_12], %12 {strides = array<i32>} : memref<16x32xf32, #tpu.memory_space<vmem>>, vector<16x32xf32>,
    } else {
    }
    %c0 = arith.constant 0 : index
    %c0_1 = arith.constant 0 : index
    %3 = vector.load %arg7[%c0, %c0_1] : memref<16x32xf32, #tpu.memory_space<vmem>>, vector<16x32xf32>
    %c0_2 = arith.constant 0 : index
    %c0_3 = arith.constant 0 : index
    %4 = vector.load %arg3[%c0_2, %c0_3] : memref<16x512xbf16, #tpu.memory_space<vmem>>, vector<16x512xbf16>
    %c0_4 = arith.constant 0 : index
    %c0_5 = arith.constant 0 : index
    %5 = vector.load %arg4[%c0_4, %c0_5] : memref<32x512xbf16, #tpu.memory_space<vmem>>, vector<32x512xbf16>
    %cst = arith.constant dense<0.000000e+00> : vector<16x32xf32>
    %6 = tpu.matmul %4, %5, %cst {dimension_numbers = #tpu.dot_dimension_numbers<[1], [1], [0], [0], [0, 0, 1, 0], [], []>} : vector<16x512xbf16>, vector<32x512xbf16>, vector<16x32xf32> -> vector<16x32xf32>
    %7 = arith.addf %3, %6 : vector<16x32xf32>
    %c0_6 = arith.constant 0 : index
    %c0_7 = arith.constant 0 : index
    %8 = vector.load %arg7[%c0_6, %c0_7] : memref<16x32xf32, #tpu.memory_space<vmem>>, vector<16x32xf32>
    tpu.vector_store %arg7[%c0_6, %c0_7], %7 {strides = array<i32>} : memref<16x32xf32, #tpu.memory_space<vmem>>, vector<16x32xf32>,
    %c0_i32_8 = arith.constant 0 : i32
    %9 = arith.cmpi eq, %arg2, %c0_i32_8 : i32
    %10 = arith.extui %9 : i1 to i32
    %c0_i32_9 = arith.constant 0 : i32
    %11 = arith.cmpi ne, %10, %c0_i32_9 : i32
    scf.if %11 {
      %c0_10 = arith.constant 0 : index
      %c0_11 = arith.constant 0 : index
      %12 = vector.load %arg7[%c0_10, %c0_11] : memref<16x32xf32, #tpu.memory_space<vmem>>, vector<16x32xf32>
      %c0_12 = arith.constant 0 : index
      %c0_13 = arith.constant 0 : index
      %13 = vector.load %arg5[%c0_12, %c0_13] : memref<1x32xbf16, #tpu.memory_space<vmem>>, vector<1x32xbf16>
      %14 = arith.extf %13 : vector<1x32xbf16> to vector<1x32xf32>
      %15 = vector.broadcast %14 : vector<1x32xf32> to vector<16x32xf32>
      %16 = arith.addf %12, %15 : vector<16x32xf32>
      %17 = arith.truncf %16 : vector<16x32xf32> to vector<16x32xbf16>
      %c0_14 = arith.constant 0 : index
      %c0_15 = arith.constant 0 : index
      %18 = vector.load %arg6[%c0_14, %c0_15] : memref<16x32xbf16, #tpu.memory_space<vmem>>, vector<16x32xbf16>
      tpu.vector_store %arg6[%c0_14, %c0_15], %17 {strides = array<i32>} : memref<16x32xbf16, #tpu.memory_space<vmem>>, vector<16x32xbf16>,
    } else {
    }
    return
  }
  func.func @transform_0(%arg0: i32, %arg1: i32, %arg2: i32) -> (i32, i32) {
    %c0_i32 = arith.constant 0 : i32
    return %arg0, %arg2 : i32, i32
  }
  func.func @transform_1(%arg0: i32, %arg1: i32, %arg2: i32) -> (i32, i32) {
    %c0_i32 = arith.constant 0 : i32
    return %arg1, %arg2 : i32, i32
  }
  func.func @transform_2(%arg0: i32, %arg1: i32, %arg2: i32) -> (i32, i32) {
    %c0_i32 = arith.constant 0 : i32
    %c0_i32_0 = arith.constant 0 : i32
    return %c0_i32, %arg1 : i32, i32
  }
  func.func @transform_3(%arg0: i32, %arg1: i32, %arg2: i32) -> (i32, i32) {
    %c0_i32 = arith.constant 0 : i32
    return %arg0, %arg1 : i32, i32
  }
}

module attributes {stable_mosaic.version = 11 : i64} {
  func.func @_flash_kernel(%arg0: i32, %arg1: i32, %arg2: i32, %arg3: i32, %arg4: memref<1x8x128xbf16, #tpu.memory_space<vmem>>, %arg5: memref<1x8x128xbf16, #tpu.memory_space<vmem>>, %arg6: memref<1x8x128xbf16, #tpu.memory_space<vmem>>, %arg7: memref<8x128xf32, #tpu.memory_space<vmem>>, %arg8: memref<8x128xf32, #tpu.memory_space<vmem>>, %arg9: memref<1x8x128xbf16, #tpu.memory_space<vmem>>, %arg10: memref<8x128xbf16, #tpu.memory_space<vmem>>, %arg11: memref<8x1xf32, #tpu.memory_space<vmem>>, %arg12: memref<8x1xf32, #tpu.memory_space<vmem>>, %arg13: memref<8x128xf32, #tpu.memory_space<vmem>>) attributes {dimension_semantics = [#tpu.dimension_semantics<parallel>, #tpu.dimension_semantics<parallel>, #tpu.dimension_semantics<parallel>, #tpu.dimension_semantics<arbitrary>], iteration_bounds = array<i64: 2, 4, 1, 1>, scalar_prefetch = 0 : i64, scratch_operands = 4 : i64, tpu.core_type = #tpu.core_type<tc>, window_params = [{transform_indices = @transform_0, window_bounds = array<i64: 1, 8, 128>}, {transform_indices = @transform_1, window_bounds = array<i64: 1, 8, 128>}, {transform_indices = @transform_2, window_bounds = array<i64: 1, 8, 128>}, {transform_indices = @transform_3, window_bounds = array<i64: 8, 128>}, {transform_indices = @transform_4, window_bounds = array<i64: 8, 128>}, {transform_indices = @transform_5, window_bounds = array<i64: 1, 8, 128>}]} {
    %c0_i32 = arith.constant 0 : i32
    %0 = arith.cmpi eq, %arg3, %c0_i32 : i32
    %1 = arith.extui %0 : i1 to i32
    %c0_i32_0 = arith.constant 0 : i32
    %2 = arith.cmpi ne, %1, %c0_i32_0 : i32
    scf.if %2 {
      %c0 = arith.constant 0 : index
      %c0_6 = arith.constant 0 : index
      %c0_7 = arith.constant 0 : index
      %13 = vector.load %arg4[%c0, %c0_6, %c0_7] : memref<1x8x128xbf16, #tpu.memory_space<vmem>>, vector<1x8x128xbf16>
      %14 = vector.shape_cast %13 : vector<1x8x128xbf16> to vector<8x128xbf16>
      %15 = arith.extf %14 : vector<8x128xbf16> to vector<8x128xf32>
      %c0_8 = arith.constant 0 : index
      %c0_9 = arith.constant 0 : index
      %16 = vector.load %arg7[%c0_8, %c0_9] : memref<8x128xf32, #tpu.memory_space<vmem>>, vector<8x128xf32>
      %17 = arith.mulf %15, %16 : vector<8x128xf32>
      %c127_i32 = arith.constant 127 : i32
      %18 = tpu.dynamic_rotate %15 by %c127_i32 dim 1 : vector<8x128xf32>, i32 -> vector<8x128xf32>
      %c1_i32_10 = arith.constant 1 : i32
      %19 = tpu.dynamic_rotate %15 by %c1_i32_10 dim 1 : vector<8x128xf32>, i32 -> vector<8x128xf32>
      %20 = tpu.iota {dimensions = array<i32: 1>} : vector<8x128xi32>
      %c2_i32 = arith.constant 2 : i32
      %c0_i32_11 = arith.constant 0 : i32
      %21 = arith.cmpi eq, %c2_i32, %c0_i32_11 : i32
      %c1_i32_12 = arith.constant 1 : i32
      %22 = arith.select %21, %c1_i32_12, %c2_i32 : i32
      %23 = vector.broadcast %22 : i32 to vector<8x128xi32>
      %24 = arith.remsi %20, %23 : vector<8x128xi32>
      %c0_i32_13 = arith.constant 0 : i32
      %25 = vector.broadcast %c0_i32_13 : i32 to vector<8x128xi32>
      %26 = arith.cmpi ne, %24, %25 : vector<8x128xi32>
      %c0_i32_14 = arith.constant 0 : i32
      %27 = vector.broadcast %c0_i32_14 : i32 to vector<8x128xi32>
      %28 = arith.cmpi slt, %24, %27 : vector<8x128xi32>
      %c0_i32_15 = arith.constant 0 : i32
      %29 = arith.cmpi slt, %22, %c0_i32_15 : i32
      %30 = vector.broadcast %29 : i1 to vector<8x128xi1>
      %31 = vector.broadcast %30 : vector<8x128xi1> to vector<8x128xi1>
      %32 = arith.xori %28, %31 : vector<8x128xi1>
      %33 = arith.andi %32, %26 : vector<8x128xi1>
      %34 = vector.broadcast %22 : i32 to vector<8x128xi32>
      %35 = arith.addi %24, %34 : vector<8x128xi32>
      %36 = arith.select %33, %35, %24 : vector<8x128xi1>, vector<8x128xi32>
      %c0_i32_16 = arith.constant 0 : i32
      %37 = vector.broadcast %c0_i32_16 : i32 to vector<8x128xi32>
      %38 = arith.cmpi eq, %36, %37 : vector<8x128xi32>
      %cst = arith.constant 0.000000e+00 : f32
      %39 = vector.broadcast %cst : f32 to vector<8x128xf32>
      %40 = arith.subf %39, %18 : vector<8x128xf32>
      %41 = arith.select %38, %40, %19 : vector<8x128xi1>, vector<8x128xf32>
      %c0_17 = arith.constant 0 : index
      %c0_18 = arith.constant 0 : index
      %42 = vector.load %arg8[%c0_17, %c0_18] : memref<8x128xf32, #tpu.memory_space<vmem>>, vector<8x128xf32>
      %43 = arith.mulf %41, %42 : vector<8x128xf32>
      %44 = arith.addf %17, %43 : vector<8x128xf32>
      %45 = arith.truncf %44 : vector<8x128xf32> to vector<8x128xbf16>
      %c0_19 = arith.constant 0 : index
      %c0_20 = arith.constant 0 : index
      %46 = vector.load %arg10[%c0_19, %c0_20] : memref<8x128xbf16, #tpu.memory_space<vmem>>, vector<8x128xbf16>
      tpu.vector_store %arg10[%c0_19, %c0_20], %45 {strides = array<i32>} : memref<8x128xbf16, #tpu.memory_space<vmem>>, vector<8x128xbf16>,
      %cst_21 = arith.constant -1.000000e+30 : f32
      %47 = vector.broadcast %cst_21 : f32 to vector<8x1xf32>
      %c0_22 = arith.constant 0 : index
      %c0_23 = arith.constant 0 : index
      %48 = vector.load %arg11[%c0_22, %c0_23] : memref<8x1xf32, #tpu.memory_space<vmem>>, vector<8x1xf32>
      tpu.vector_store %arg11[%c0_22, %c0_23], %47 {strides = array<i32>} : memref<8x1xf32, #tpu.memory_space<vmem>>, vector<8x1xf32>,
      %cst_24 = arith.constant 0.000000e+00 : f32
      %49 = vector.broadcast %cst_24 : f32 to vector<8x1xf32>
      %c0_25 = arith.constant 0 : index
      %c0_26 = arith.constant 0 : index
      %50 = vector.load %arg12[%c0_25, %c0_26] : memref<8x1xf32, #tpu.memory_space<vmem>>, vector<8x1xf32>
      tpu.vector_store %arg12[%c0_25, %c0_26], %49 {strides = array<i32>} : memref<8x1xf32, #tpu.memory_space<vmem>>, vector<8x1xf32>,
      %cst_27 = arith.constant 0.000000e+00 : f32
      %51 = vector.broadcast %cst_27 : f32 to vector<8x128xf32>
      %c0_28 = arith.constant 0 : index
      %c0_29 = arith.constant 0 : index
      %52 = vector.load %arg13[%c0_28, %c0_29] : memref<8x128xf32, #tpu.memory_space<vmem>>, vector<8x128xf32>
      tpu.vector_store %arg13[%c0_28, %c0_29], %51 {strides = array<i32>} : memref<8x128xf32, #tpu.memory_space<vmem>>, vector<8x128xf32>,
    } else {
    }
    %c8_i32 = arith.constant 8 : i32
    %3 = arith.muli %arg2, %c8_i32 : i32
    %c8_i32_1 = arith.constant 8 : i32
    %4 = arith.addi %3, %c8_i32_1 : i32
    %c1_i32 = arith.constant 1 : i32
    %5 = arith.subi %4, %c1_i32 : i32
    %c8_i32_2 = arith.constant 8 : i32
    %6 = arith.muli %arg3, %c8_i32_2 : i32
    %7 = arith.cmpi sge, %5, %6 : i32
    %8 = arith.extui %7 : i1 to i32
    %c0_i32_3 = arith.constant 0 : i32
    %9 = arith.cmpi ne, %8, %c0_i32_3 : i32
    scf.if %9 {
      %c0 = arith.constant 0 : index
      %c0_6 = arith.constant 0 : index
      %c0_7 = arith.constant 0 : index
      %13 = vector.load %arg5[%c0, %c0_6, %c0_7] : memref<1x8x128xbf16, #tpu.memory_space<vmem>>, vector<1x8x128xbf16>
      %14 = vector.shape_cast %13 : vector<1x8x128xbf16> to vector<8x128xbf16>
      %c0_8 = arith.constant 0 : index
      %c0_9 = arith.constant 0 : index
      %15 = vector.load %arg10[%c0_8, %c0_9] : memref<8x128xbf16, #tpu.memory_space<vmem>>, vector<8x128xbf16>
      %cst = arith.constant dense<0.000000e+00> : vector<8x8xf32>
      %16 = tpu.matmul %15, %14, %cst {dimension_numbers = #tpu.dot_dimension_numbers<[1], [1], [0], [0], [0, 0, 1, 0], [], []>} : vector<8x128xbf16>, vector<8x128xbf16>, vector<8x8xf32> -> vector<8x8xf32>
      %cst_10 = arith.constant 0.353553385 : f32
      %17 = vector.broadcast %cst_10 : f32 to vector<8x8xf32>
      %18 = arith.mulf %16, %17 : vector<8x8xf32>
      %c8_i32_11 = arith.constant 8 : i32
      %19 = arith.muli %arg2, %c8_i32_11 : i32
      %20 = tpu.iota {dimensions = array<i32: 0>} : vector<8x8xi32>
      %21 = vector.broadcast %19 : i32 to vector<8x8xi32>
      %22 = arith.addi %21, %20 : vector<8x8xi32>
      %c8_i32_12 = arith.constant 8 : i32
      %23 = arith.muli %arg3, %c8_i32_12 : i32
      %24 = tpu.iota {dimensions = array<i32: 1>} : vector<8x8xi32>
      %25 = vector.broadcast %23 : i32 to vector<8x8xi32>
      %26 = arith.addi %25, %24 : vector<8x8xi32>
      %27 = arith.cmpi sge, %22, %26 : vector<8x8xi32>
      %cst_13 = arith.constant -1.000000e+30 : f32
      %28 = vector.broadcast %cst_13 : f32 to vector<8x8xf32>
      %29 = arith.select %27, %18, %28 : vector<8x8xi1>, vector<8x8xf32>
      %c0_14 = arith.constant 0 : index
      %c0_15 = arith.constant 0 : index
      %30 = vector.load %arg11[%c0_14, %c0_15] : memref<8x1xf32, #tpu.memory_space<vmem>>, vector<8x1xf32>
      %cst_16 = arith.constant dense<0xFF800000> : vector<8xf32>
      %31 = vector.multi_reduction <maximumf>, %29, %cst_16 [1] : vector<8x8xf32> to vector<8xf32>
      %32 = vector.shape_cast %31 : vector<8xf32> to vector<8x1xf32>
      %33 = arith.maximumf %30, %32 : vector<8x1xf32>
      %34 = arith.subf %30, %33 : vector<8x1xf32>
      %35 = math.exp %34 : vector<8x1xf32>
      %36 = vector.broadcast %33 : vector<8x1xf32> to vector<8x8xf32>
      %37 = arith.subf %29, %36 : vector<8x8xf32>
      %38 = math.exp %37 : vector<8x8xf32>
      %c0_17 = arith.constant 0 : index
      %c0_18 = arith.constant 0 : index
      %39 = vector.load %arg12[%c0_17, %c0_18] : memref<8x1xf32, #tpu.memory_space<vmem>>, vector<8x1xf32>
      %40 = arith.mulf %35, %39 : vector<8x1xf32>
      %cst_19 = arith.constant dense<0.000000e+00> : vector<8xf32>
      %41 = vector.multi_reduction <add>, %38, %cst_19 [1] : vector<8x8xf32> to vector<8xf32>
      %42 = vector.shape_cast %41 : vector<8xf32> to vector<8x1xf32>
      %43 = arith.addf %40, %42 : vector<8x1xf32>
      %c0_20 = arith.constant 0 : index
      %c0_21 = arith.constant 0 : index
      %44 = vector.load %arg12[%c0_20, %c0_21] : memref<8x1xf32, #tpu.memory_space<vmem>>, vector<8x1xf32>
      tpu.vector_store %arg12[%c0_20, %c0_21], %43 {strides = array<i32>} : memref<8x1xf32, #tpu.memory_space<vmem>>, vector<8x1xf32>,
      %c0_22 = arith.constant 0 : index
      %c0_23 = arith.constant 0 : index
      %45 = vector.load %arg13[%c0_22, %c0_23] : memref<8x128xf32, #tpu.memory_space<vmem>>, vector<8x128xf32>
      %46 = vector.broadcast %35 : vector<8x1xf32> to vector<8x128xf32>
      %47 = arith.mulf %46, %45 : vector<8x128xf32>
      %48 = arith.truncf %38 : vector<8x8xf32> to vector<8x8xbf16>
      %c0_24 = arith.constant 0 : index
      %c0_25 = arith.constant 0 : index
      %c0_26 = arith.constant 0 : index
      %49 = vector.load %arg6[%c0_24, %c0_25, %c0_26] : memref<1x8x128xbf16, #tpu.memory_space<vmem>>, vector<1x8x128xbf16>
      %50 = vector.shape_cast %49 : vector<1x8x128xbf16> to vector<8x128xbf16>
      %cst_27 = arith.constant dense<0.000000e+00> : vector<8x128xf32>
      %51 = tpu.matmul %48, %50, %cst_27 {dimension_numbers = #tpu.dot_dimension_numbers<[1], [0], [0], [1], [0, 0, 1, 1], [], []>} : vector<8x8xbf16>, vector<8x128xbf16>, vector<8x128xf32> -> vector<8x128xf32>
      %52 = arith.addf %47, %51 : vector<8x128xf32>
      %c0_28 = arith.constant 0 : index
      %c0_29 = arith.constant 0 : index
      %53 = vector.load %arg13[%c0_28, %c0_29] : memref<8x128xf32, #tpu.memory_space<vmem>>, vector<8x128xf32>
      tpu.vector_store %arg13[%c0_28, %c0_29], %52 {strides = array<i32>} : memref<8x128xf32, #tpu.memory_space<vmem>>, vector<8x128xf32>,
      %c0_30 = arith.constant 0 : index
      %c0_31 = arith.constant 0 : index
      %54 = vector.load %arg11[%c0_30, %c0_31] : memref<8x1xf32, #tpu.memory_space<vmem>>, vector<8x1xf32>
      tpu.vector_store %arg11[%c0_30, %c0_31], %33 {strides = array<i32>} : memref<8x1xf32, #tpu.memory_space<vmem>>, vector<8x1xf32>,
    } else {
    }
    %c0_i32_4 = arith.constant 0 : i32
    %10 = arith.cmpi eq, %arg3, %c0_i32_4 : i32
    %11 = arith.extui %10 : i1 to i32
    %c0_i32_5 = arith.constant 0 : i32
    %12 = arith.cmpi ne, %11, %c0_i32_5 : i32
    scf.if %12 {
      %c0 = arith.constant 0 : index
      %c0_6 = arith.constant 0 : index
      %13 = vector.load %arg12[%c0, %c0_6] : memref<8x1xf32, #tpu.memory_space<vmem>>, vector<8x1xf32>
      %14 = tpu.reciprocal %13 {approx = true} : vector<8x1xf32> -> vector<8x1xf32>
      %c0_7 = arith.constant 0 : index
      %c0_8 = arith.constant 0 : index
      %15 = vector.load %arg13[%c0_7, %c0_8] : memref<8x128xf32, #tpu.memory_space<vmem>>, vector<8x128xf32>
      %16 = vector.broadcast %14 : vector<8x1xf32> to vector<8x128xf32>
      %17 = arith.mulf %15, %16 : vector<8x128xf32>
      %18 = arith.truncf %17 : vector<8x128xf32> to vector<8x128xbf16>
      %c0_9 = arith.constant 0 : index
      %c0_10 = arith.constant 0 : index
      %c0_11 = arith.constant 0 : index
      %19 = vector.load %arg9[%c0_9, %c0_10, %c0_11] : memref<1x8x128xbf16, #tpu.memory_space<vmem>>, vector<1x8x128xbf16>
      %20 = vector.shape_cast %19 : vector<1x8x128xbf16> to vector<8x128xbf16>
      %21 = vector.shape_cast %18 : vector<8x128xbf16> to vector<1x8x128xbf16>
      tpu.vector_store %arg9[%c0_9, %c0_10, %c0_11], %21 {strides = array<i32>} : memref<1x8x128xbf16, #tpu.memory_space<vmem>>, vector<1x8x128xbf16>,
    } else {
    }
    return
  }
  func.func @transform_0(%arg0: i32, %arg1: i32, %arg2: i32, %arg3: i32) -> (i32, i32, i32) {
    %c0_i32 = arith.constant 0 : i32
    return %arg0, %arg2, %arg1 : i32, i32, i32
  }
  func.func @transform_1(%arg0: i32, %arg1: i32, %arg2: i32, %arg3: i32) -> (i32, i32, i32) {
    %c0_i32 = arith.constant 0 : i32
    return %arg0, %arg3, %arg1 : i32, i32, i32
  }
  func.func @transform_2(%arg0: i32, %arg1: i32, %arg2: i32, %arg3: i32) -> (i32, i32, i32) {
    %c0_i32 = arith.constant 0 : i32
    return %arg0, %arg3, %arg1 : i32, i32, i32
  }
  func.func @transform_3(%arg0: i32, %arg1: i32, %arg2: i32, %arg3: i32) -> (i32, i32) {
    %c0_i32 = arith.constant 0 : i32
    %c0_i32_0 = arith.constant 0 : i32
    return %arg2, %c0_i32 : i32, i32
  }
  func.func @transform_4(%arg0: i32, %arg1: i32, %arg2: i32, %arg3: i32) -> (i32, i32) {
    %c0_i32 = arith.constant 0 : i32
    %c0_i32_0 = arith.constant 0 : i32
    return %arg2, %c0_i32 : i32, i32
  }
  func.func @transform_5(%arg0: i32, %arg1: i32, %arg2: i32, %arg3: i32) -> (i32, i32, i32) {
    %c0_i32 = arith.constant 0 : i32
    return %arg0, %arg2, %arg1 : i32, i32, i32
  }
}

</mosaic_0001>

<llo_original>
// kernel: xpos_attention_flash_forward.6
$region0: #{xpos_attention_flash_forward.6}
  #allocation0 [shape = 'u32[]', space=smem, size = 0x4, offset = 0x4, fixed_abs, tag = 'smem constant byte address 0x4 - core index']
  #allocation1 [shape = 'u32[72,128]{1,0:T(1,128)}', space=vmem, size = 0x9000, scoped, tag = 'internal scratch']
  #allocation2 [shape = 'f32[16,256]{1,0:T(8,128)}', space=vmem, size = 0x4000, scoped, tag = 'scratch operand']
  %s0 = inlined_call_operand.vmem [shape: bf16[16,32], index: 0, kind: input, shape index: {}]
  %s1 = inlined_call_operand.vmem [shape: bf16[512,32], index: 1, kind: input, shape index: {}]
  %s2 = inlined_call_operand.vmem [shape: bf16[1,512], index: 2, kind: input, shape index: {}]
  %s3 = inlined_call_operand.vmem [shape: bf16[16,512], index: 3, kind: output, shape index: {}]
  %s4 = sld [smem:[#allocation0]]
  $region87: #{xpos_attention_flash_forward.6} parent=0
    _
  %s6 = ssub.s32 1, %s4
  %s7 = scalar_select 0, %s6, %s4
  $region1: #{xpos_attention_flash_forward.6} parent=0
    #allocation3 [shape = 'u8[16384]{0}', space=vmem, size = 0x4000, scoped, tag = 'output window, operand 0']
    loop: start=0, step=1, limit=4
    $region2: #{xpos_attention_flash_forward.6} parent=1 // loop_pre_header
      _
    $region3: #{xpos_attention_flash_forward.6} parent=1 // loop_header
      %s9 = sphi 0, %s13
      %p10 = scmp.ge.s32.totalorder %s9, 4
      %s16 = sphi 0, %s35
      %s17 = sphi 0, %s31
      %s18 = sphi 0, %s27
      %s19 = sphi 0, %s16
      %s20 = sphi 0, %s17
      %s21 = sphi 0, %s18
      %s22 = sphi 0, %s19
      %s23 = sphi 0, %s20
      %s24 = sphi 0, %s21
      %s40 = sphi 0, %s42
      %s43 = sphi 0, %s40
      %s44 = sphi 0, %s43
      %s60 = sphi 0, %s44
      %s68 = sphi 0, %s70
      %s71 = sphi 0, %s68
      %s72 = sphi 0, %s71
      %s88 = sphi 0, %s72
      %s94 = sphi 0, %s96
      %s97 = sphi 0, %s94
      %s98 = sphi 0, %s97
      %s114 = sphi 0, %s98
      %s122 = sphi 0, %s124
      %s125 = sphi 0, %s122
      %s126 = sphi 0, %s125
      %s142 = sphi 0, %s126
    $region4: #{xpos_attention_flash_forward.6} parent=1 // loop_header_branch
      %12 = sbr.rel (%p10) target = $region8
    $region5: #{xpos_attention_flash_forward.6} parent=1 // loop_body
      %s14 = ssub.s32 %s9, 1
      %s15 = ssub.s32 %s9, 2
      %s25 = sadd.s32 1, %s18
      %p26 = scmp.ge.s32.totalorder %s25, 1
      %s27 = scalar_select %p26, 0, %s25
      %s28 = sadd.s32 1, %s17
      %s29 = scalar_select %p26, %s28, %s17
      %p30 = scmp.ge.s32.totalorder %s29, 2
      %s31 = scalar_select %p30, 0, %s29
      %s32 = sadd.s32 1, %s16
      %s33 = scalar_select %p30, %s32, %s16
      %p34 = scmp.ge.s32.totalorder %s33, 1
      %s35 = scalar_select %p34, 0, %s33
      %s36 = ssub.s32 %s16, %s35
      %s37 = ssub.s32 %s18, %s27
      %s38 = sor.u32 %s36, %s37
      %p39 = scmp.eq.s32.totalorder %s38, 0
      %s41 = sadd.s32 %s40, 1
      %s42 = scalar_select %p39, %s40, %s41
      %p45 = pneg %p39
      %p46 = scmp.eq.s32.totalorder %s9, 1
      %p47 = por %p45, %p46
      %p48 = scmp.ne.s32.totalorder %s40, %s43
      %p49 = scmp.eq.s32.totalorder %s9, 0
      %p50 = por %p48, %p49
      %p51 = scmp.ne.s32.totalorder %s40, %s43
      %p52 = scmp.eq.s32.totalorder %s14, 1
      %p53 = por %p51, %p52
      %p54 = scmp.ne.s32.totalorder %s43, %s44
      %p55 = scmp.eq.s32.totalorder %s14, 0
      %p56 = por %p54, %p55
      %p57 = scmp.ne.s32.totalorder %s43, %s44
      %p58 = scmp.eq.s32.totalorder %s15, 1
      %p59 = por %p57, %p58
      %p61 = scmp.ne.s32.totalorder %s44, %s60
      %p62 = scmp.eq.s32.totalorder %s15, 0
      %p63 = por %p61, %p62
      %s64 = ssub.s32 %s17, %s31
      %s65 = ssub.s32 %s18, %s27
      %s66 = sor.u32 %s64, %s65
      %p67 = scmp.eq.s32.totalorder %s66, 0
      %s69 = sadd.s32 %s68, 1
      %s70 = scalar_select %p67, %s68, %s69
      %p73 = pneg %p67
      %p74 = scmp.eq.s32.totalorder %s9, 1
      %p75 = por %p73, %p74
      %p76 = scmp.ne.s32.totalorder %s68, %s71
      %p77 = scmp.eq.s32.totalorder %s9, 0
      %p78 = por %p76, %p77
      %p79 = scmp.ne.s32.totalorder %s68, %s71
      %p80 = scmp.eq.s32.totalorder %s14, 1
      %p81 = por %p79, %p80
      %p82 = scmp.ne.s32.totalorder %s71, %s72
      %p83 = scmp.eq.s32.totalorder %s14, 0
      %p84 = por %p82, %p83
      %p85 = scmp.ne.s32.totalorder %s71, %s72
      %p86 = scmp.eq.s32.totalorder %s15, 1
      %p87 = por %p85, %p86
      %p89 = scmp.ne.s32.totalorder %s72, %s88
      %p90 = scmp.eq.s32.totalorder %s15, 0
      %p91 = por %p89, %p90
      %s92 = ssub.s32 %s17, %s31
      %p93 = scmp.eq.s32.totalorder %s92, 0
      %s95 = sadd.s32 %s94, 1
      %s96 = scalar_select %p93, %s94, %s95
      %p99 = pneg %p93
      %p100 = scmp.eq.s32.totalorder %s9, 1
      %p101 = por %p99, %p100
      %p102 = scmp.ne.s32.totalorder %s94, %s97
      %p103 = scmp.eq.s32.totalorder %s9, 0
      %p104 = por %p102, %p103
      %p105 = scmp.ne.s32.totalorder %s94, %s97
      %p106 = scmp.eq.s32.totalorder %s14, 1
      %p107 = por %p105, %p106
      %p108 = scmp.ne.s32.totalorder %s97, %s98
      %p109 = scmp.eq.s32.totalorder %s14, 0
      %p110 = por %p108, %p109
      %p111 = scmp.ne.s32.totalorder %s97, %s98
      %p112 = scmp.eq.s32.totalorder %s15, 1
      %p113 = por %p111, %p112
      %p115 = scmp.ne.s32.totalorder %s98, %s114
      %p116 = scmp.eq.s32.totalorder %s15, 0
      %p117 = por %p115, %p116
      %s118 = ssub.s32 %s16, %s35
      %s119 = ssub.s32 %s17, %s31
      %s120 = sor.u32 %s118, %s119
      %p121 = scmp.eq.s32.totalorder %s120, 0
      %s123 = sadd.s32 %s122, 1
      %s124 = scalar_select %p121, %s122, %s123
      %p127 = pneg %p121
      %p128 = scmp.eq.s32.totalorder %s9, 1
      %p129 = por %p127, %p128
      %p130 = scmp.ne.s32.totalorder %s122, %s125
      %p131 = scmp.eq.s32.totalorder %s9, 0
      %p132 = por %p130, %p131
      %p133 = scmp.ne.s32.totalorder %s122, %s125
      %p134 = scmp.eq.s32.totalorder %s14, 1
      %p135 = por %p133, %p134
      %p136 = scmp.ne.s32.totalorder %s125, %s126
      %p137 = scmp.eq.s32.totalorder %s14, 0
      %p138 = por %p136, %p137
      %p139 = scmp.ne.s32.totalorder %s125, %s126
      %p140 = scmp.eq.s32.totalorder %s15, 1
      %p141 = por %p139, %p140
      %p143 = scmp.ne.s32.totalorder %s126, %s142
      %p144 = scmp.eq.s32.totalorder %s15, 0
      %p145 = por %p143, %p144
      %p146 = scmp.le.s32.totalorder 1, %s9
      %p147 = scmp.lt.s32.totalorder %s9, 3
      %p148 = pnand %p146, %p147
      %p149 = pneg %p148
      // Predicated region
      $region9: #{xpos_attention_flash_forward.6} parent=5 // pred_check
        _
      $region10: #{xpos_attention_flash_forward.6} parent=5 // pred_check_branch
        %151 = sbr.rel (%p148) target = $region12
      $region11: #{xpos_attention_flash_forward.6} parent=5 // pred_region
        %s152 = ssub.s32 %s9, 1
        // Predicated region
        $region13: #{xpos_attention_flash_forward.6} parent=11 // pred_check
          %p153 = pneg %p56
        $region14: #{xpos_attention_flash_forward.6} parent=11 // pred_check_branch
          %155 = sbr.rel (%p153) target = $region16
        $region15: #{xpos_attention_flash_forward.6} parent=11 // pred_region
          %s156 = smul.u32 2, %s19
          %p157 = scmp.lt.s32.totalorder %s156, 1
          %s158 = scalar_select %p157, %s156, 1
          %p159 = scmp.lt.s32.totalorder %s21, 0
          %s160 = scalar_select %p159, %s21, 0
          %s161 = sadd.s32 %s160, %s158
          %s162 = smul.addr %s161, 4
          %s163 = scalar_lea.vmem %s0, %s162
          %s164 = smul.u32 2, %s19
        $region16: #{xpos_attention_flash_forward.6} parent=11 // pred_fallthru
          _
      $region12: #{xpos_attention_flash_forward.6} parent=5 // pred_fallthru
        _
      %p165 = scmp.lt.s32.totalorder %s9, 2
      // Predicated region
      $region17: #{xpos_attention_flash_forward.6} parent=5 // pred_check
        %p166 = pneg %p165
      $region18: #{xpos_attention_flash_forward.6} parent=5 // pred_check_branch
        %168 = sbr.rel (%p166) target = $region20
      $region19: #{xpos_attention_flash_forward.6} parent=5 // pred_region
        // Predicated region
        $region21: #{xpos_attention_flash_forward.6} parent=19 // pred_check
          %p169 = pneg %p78
        $region22: #{xpos_attention_flash_forward.6} parent=19 // pred_check_branch
          %171 = sbr.rel (%p169) target = $region24
        $region23: #{xpos_attention_flash_forward.6} parent=19 // pred_region
          %s172 = smul.u32 32, %s17
          %p173 = scmp.lt.s32.totalorder %s172, 63
          %s174 = scalar_select %p173, %s172, 63
          %p175 = scmp.lt.s32.totalorder %s18, 0
          %s176 = scalar_select %p175, %s18, 0
          %s177 = sadd.s32 %s176, %s174
          %s178 = smul.addr %s177, 4
          %s179 = scalar_lea.vmem %s1, %s178
          %s180 = smul.u32 32, %s17
        $region24: #{xpos_attention_flash_forward.6} parent=19 // pred_fallthru
          _
        // Predicated region
        $region25: #{xpos_attention_flash_forward.6} parent=19 // pred_check
          %p181 = pneg %p104
        $region26: #{xpos_attention_flash_forward.6} parent=19 // pred_check_branch
          %183 = sbr.rel (%p181) target = $region28
        $region27: #{xpos_attention_flash_forward.6} parent=19 // pred_region
          %s184 = smul.u32 2, %s17
          %p185 = scmp.lt.s32.totalorder %s184, 3
          %s186 = scalar_select %p185, %s184, 3
          %s187 = scalar_lea.vmem %s2, %s186
          %s188 = smul.u32 2, %s17
        $region28: #{xpos_attention_flash_forward.6} parent=19 // pred_fallthru
          _
      $region20: #{xpos_attention_flash_forward.6} parent=5 // pred_fallthru
        _
      %p189 = scmp.le.s32.totalorder 1, %s9
      %p190 = scmp.lt.s32.totalorder %s9, 3
      %p191 = pnand %p189, %p190
      %p192 = pneg %p191
      // Predicated region
      $region29: #{xpos_attention_flash_forward.6} parent=5 // pred_check
        _
      $region30: #{xpos_attention_flash_forward.6} parent=5 // pred_check_branch
        %194 = sbr.rel (%p191) target = $region32
      $region31: #{xpos_attention_flash_forward.6} parent=5 // pred_region
        %s195 = ssub.s32 %s9, 1
        %s196 = smul.u32 2, %s19
        %p197 = scmp.lt.s32.totalorder %s196, 1
        %s198 = scalar_select %p197, %s196, 1
        %p199 = scmp.lt.s32.totalorder %s21, 0
        %s200 = scalar_select %p199, %s21, 0
        %s201 = sadd.s32 %s200, %s198
        %s202 = smul.addr %s201, 4
        %s203 = scalar_lea.vmem %s0, %s202
        %p204 = pneg %p56
        %p205 = pneg %p53
        %s206 = smul.u32 32, %s20
        %p207 = scmp.lt.s32.totalorder %s206, 63
        %s208 = scalar_select %p207, %s206, 63
        %p209 = scmp.lt.s32.totalorder %s21, 0
        %s210 = scalar_select %p209, %s21, 0
        %s211 = sadd.s32 %s210, %s208
        %s212 = smul.addr %s211, 4
        %s213 = scalar_lea.vmem %s1, %s212
        %p214 = pneg %p84
        %p215 = pneg %p81
        %s216 = smul.u32 2, %s20
        %p217 = scmp.lt.s32.totalorder %s216, 3
        %s218 = scalar_select %p217, %s216, 3
        %s219 = scalar_lea.vmem %s2, %s218
        %p220 = pneg %p110
        %p221 = pneg %p107
        %p222 = pneg %p138
        %p223 = pneg %p135
        %s224 = sand.u32 %s125, 1
        %s225 = sand.u32 %s125, 1
        %s226 = smul.addr %s225, 16
        %s227 = scalar_lea.vmem [#allocation3], %s226
        %s228 = smul.u32 2, %s19
        %p229 = scmp.lt.s32.totalorder %s228, 1
        %s230 = scalar_select %p229, %s228, 1
        %p231 = scmp.lt.s32.totalorder %s21, 0
        %s232 = scalar_select %p231, %s21, 0
        %s233 = sadd.s32 %s232, %s230
        %s234 = smul.addr %s233, 4
        %s235 = scalar_lea.vmem %s0, %s234
        %s236 = smul.u32 2, %s19
        %s237 = smul.u32 32, %s20
        %p238 = scmp.lt.s32.totalorder %s237, 63
        %s239 = scalar_select %p238, %s237, 63
        %p240 = scmp.lt.s32.totalorder %s21, 0
        %s241 = scalar_select %p240, %s21, 0
        %s242 = sadd.s32 %s241, %s239
        %s243 = smul.addr %s242, 4
        %s244 = scalar_lea.vmem %s1, %s243
        %s245 = smul.u32 32, %s20
        %s246 = smul.u32 2, %s20
        %p247 = scmp.lt.s32.totalorder %s246, 3
        %s248 = scalar_select %p247, %s246, 3
        %s249 = scalar_lea.vmem %s2, %s248
        %s250 = smul.u32 2, %s20
        %s251 = smul.u32 2, %s19
        %s252 = smul.u32 2, %s20
        %p253 = scmp.eq.s32.totalorder %s21, 0
        // Predicated region
        $region33: #{xpos_attention_flash_forward.6} parent=31 // pred_check
          %p254 = pneg %p253
        $region34: #{xpos_attention_flash_forward.6} parent=31 // pred_check_branch
          %256 = sbr.rel (%p254) target = $region36
        $region35: #{xpos_attention_flash_forward.6} parent=31 // pred_region
          %257 = vst [vmem:[#allocation2] sm:$0xff] 0.0
          %258 = vst [vmem:[#allocation2 + $0x8] sm:$0xff] 0.0
          %259 = vst [vmem:[#allocation2 + $0x10] sm:$0xff] 0.0
          %260 = vst [vmem:[#allocation2 + $0x18] sm:$0xff] 0.0
        $region36: #{xpos_attention_flash_forward.6} parent=31 // pred_fallthru
          _
        %v261 = vld [vmem:[#allocation2] sm:$0xff]
        %v262 = vld [vmem:[#allocation2 + $0x8] sm:$0xff]
        %v263 = vld [vmem:[#allocation2 + $0x10] sm:$0xff]
        %v264 = vld [vmem:[#allocation2 + $0x18] sm:$0xff]
        %v265 = vld [vmem:[%s235] sm:$0xf]
        %v266 = vld [vmem:[%s235 + $0x4] sm:$0xf]
        %v267 = vld [vmem:[%s244] sm:$0xf]
        %v268 = vld [vmem:[%s244 + $0x4] sm:$0xf]
        %v269 = vld [vmem:[%s244 + $0x8] sm:$0xf]
        %v270 = vld [vmem:[%s244 + $0xc] sm:$0xf]
        %v271 = vld [vmem:[%s244 + $0x10] sm:$0xf]
        %v272 = vld [vmem:[%s244 + $0x14] sm:$0xf]
        %v273 = vld [vmem:[%s244 + $0x18] sm:$0xf]
        %v274 = vld [vmem:[%s244 + $0x1c] sm:$0xf]
        %v275 = vld [vmem:[%s244 + $0x20] sm:$0xf]
        %v276 = vld [vmem:[%s244 + $0x24] sm:$0xf]
        %v277 = vld [vmem:[%s244 + $0x28] sm:$0xf]
        %v278 = vld [vmem:[%s244 + $0x2c] sm:$0xf]
        %v279 = vld [vmem:[%s244 + $0x30] sm:$0xf]
        %v280 = vld [vmem:[%s244 + $0x34] sm:$0xf]
        %v281 = vld [vmem:[%s244 + $0x38] sm:$0xf]
        %v282 = vld [vmem:[%s244 + $0x3c] sm:$0xf]
        %v283 = vld [vmem:[%s244 + $0x40] sm:$0xf]
        %v284 = vld [vmem:[%s244 + $0x44] sm:$0xf]
        %v285 = vld [vmem:[%s244 + $0x48] sm:$0xf]
        %v286 = vld [vmem:[%s244 + $0x4c] sm:$0xf]
        %v287 = vld [vmem:[%s244 + $0x50] sm:$0xf]
        %v288 = vld [vmem:[%s244 + $0x54] sm:$0xf]
        %v289 = vld [vmem:[%s244 + $0x58] sm:$0xf]
        %v290 = vld [vmem:[%s244 + $0x5c] sm:$0xf]
        %v291 = vld [vmem:[%s244 + $0x60] sm:$0xf]
        %v292 = vld [vmem:[%s244 + $0x64] sm:$0xf]
        %v293 = vld [vmem:[%s244 + $0x68] sm:$0xf]
        %v294 = vld [vmem:[%s244 + $0x6c] sm:$0xf]
        %v295 = vld [vmem:[%s244 + $0x70] sm:$0xf]
        %v296 = vld [vmem:[%s244 + $0x74] sm:$0xf]
        %v297 = vld [vmem:[%s244 + $0x78] sm:$0xf]
        %v298 = vld [vmem:[%s244 + $0x7c] sm:$0xf]
        %v301 = vunpack.c.l.b16 %v265
        %v302 = vunpack.c.l.b16 %v266
        %v303 = vpack.c.b16 %v302, %v301
        %v336 = vunpack.c.l.b16 %v267
        %v337 = vunpack.c.l.b16 %v268
        %v338 = vunpack.c.l.b16 %v269
        %v339 = vunpack.c.l.b16 %v270
        %v340 = vunpack.c.l.b16 %v271
        %v341 = vunpack.c.l.b16 %v272
        %v342 = vunpack.c.l.b16 %v273
        %v343 = vunpack.c.l.b16 %v274
        %v344 = vunpack.c.l.b16 %v275
        %v345 = vunpack.c.l.b16 %v276
        %v346 = vunpack.c.l.b16 %v277
        %v347 = vunpack.c.l.b16 %v278
        %v348 = vunpack.c.l.b16 %v279
        %v349 = vunpack.c.l.b16 %v280
        %v350 = vunpack.c.l.b16 %v281
        %v351 = vunpack.c.l.b16 %v282
        %v352 = vunpack.c.l.b16 %v283
        %v353 = vunpack.c.l.b16 %v284
        %v354 = vunpack.c.l.b16 %v285
        %v355 = vunpack.c.l.b16 %v286
        %v356 = vunpack.c.l.b16 %v287
        %v357 = vunpack.c.l.b16 %v288
        %v358 = vunpack.c.l.b16 %v289
        %v359 = vunpack.c.l.b16 %v290
        %v360 = vunpack.c.l.b16 %v291
        %v361 = vunpack.c.l.b16 %v292
        %v362 = vunpack.c.l.b16 %v293
        %v363 = vunpack.c.l.b16 %v294
        %v364 = vunpack.c.l.b16 %v295
        %v365 = vunpack.c.l.b16 %v296
        %v366 = vunpack.c.l.b16 %v297
        %v367 = vunpack.c.l.b16 %v298
        %v368 = vpack.c.b16 %v337, %v336
        %v369 = vpack.c.b16 %v339, %v338
        %v370 = vpack.c.b16 %v341, %v340
        %v371 = vpack.c.b16 %v343, %v342
        %v372 = vpack.c.b16 %v345, %v344
        %v373 = vpack.c.b16 %v347, %v346
        %v374 = vpack.c.b16 %v349, %v348
        %v375 = vpack.c.b16 %v351, %v350
        %v376 = vpack.c.b16 %v353, %v352
        %v377 = vpack.c.b16 %v355, %v354
        %v378 = vpack.c.b16 %v357, %v356
        %v379 = vpack.c.b16 %v359, %v358
        %v380 = vpack.c.b16 %v361, %v360
        %v381 = vpack.c.b16 %v363, %v362
        %v382 = vpack.c.b16 %v365, %v364
        %v383 = vpack.c.b16 %v367, %v366
        %vm384 = vcmask 261120
        %v386 = vsel %vm384, %v303, 0
        %v389 = vsel %vm384, %v368, 0
        %v392 = vsel %vm384, %v369, 0
        %v395 = vsel %vm384, %v370, 0
        %v398 = vsel %vm384, %v371, 0
        %v401 = vsel %vm384, %v372, 0
        %v404 = vsel %vm384, %v373, 0
        %v407 = vsel %vm384, %v374, 0
        %v410 = vsel %vm384, %v375, 0
        %v413 = vsel %vm384, %v376, 0
        %v416 = vsel %vm384, %v377, 0
        %v419 = vsel %vm384, %v378, 0
        %v422 = vsel %vm384, %v379, 0
        %v425 = vsel %vm384, %v380, 0
        %v428 = vsel %vm384, %v381, 0
        %v431 = vsel %vm384, %v382, 0
        %v434 = vsel %vm384, %v383, 0
        %436 = vmatpush.bf16.xpose.msra.mxu0 %v410
        %437 = vmatpush.bf16.xpose.msra.mxu0 %v407
        %438 = vmatpush.bf16.xpose.msra.mxu0 %v404
        %439 = vmatpush.bf16.xpose.msra.mxu0 %v401
        %440 = vmatpush.bf16.xpose.msra.mxu0 %v398
        %441 = vmatpush.bf16.xpose.msra.mxu0 %v395
        %442 = vmatpush.bf16.xpose.msra.mxu0 %v392
        %443 = vmatpush.bf16.xpose.msra.mxu0 %v389
        %444 = vmatmul.bf16.gmra.mxu0 %v386
        %v445 = vpop.f32.mrf.mxu0
        %v446 = vadd.f32 0.0, %v445
        %v447 = vpop.f32.mrf.mxu0
        %v448 = vadd.f32 0.0, %v447
        %449 = vdwg.mxu0
        %450 = vmatpush.bf16.xpose.msra.mxu0 %v434
        %451 = vmatpush.bf16.xpose.msra.mxu0 %v431
        %452 = vmatpush.bf16.xpose.msra.mxu0 %v428
        %453 = vmatpush.bf16.xpose.msra.mxu0 %v425
        %454 = vmatpush.bf16.xpose.msra.mxu0 %v422
        %455 = vmatpush.bf16.xpose.msra.mxu0 %v419
        %456 = vmatpush.bf16.xpose.msra.mxu0 %v416
        %457 = vmatpush.bf16.xpose.msra.mxu0 %v413
        %458 = vmatmul.bf16.gmra.mxu0 %v386
        %v459 = vpop.f32.mrf.mxu0
        %v460 = vadd.f32 0.0, %v459
        %v461 = vpop.f32.mrf.mxu0
        %v462 = vadd.f32 0.0, %v461
        %463 = vdwg.mxu0
        %v464 = vadd.f32 %v261, %v446
        %v465 = vadd.f32 %v262, %v460
        %v466 = vadd.f32 %v263, %v448
        %v467 = vadd.f32 %v264, %v462
        %468 = vst [vmem:[#allocation2] sm:$0xff] %v464
        %469 = vst [vmem:[#allocation2 + $0x8] sm:$0xff] %v465
        %470 = vst [vmem:[#allocation2 + $0x10] sm:$0xff] %v466
        %471 = vst [vmem:[#allocation2 + $0x18] sm:$0xff] %v467
        // Predicated region
        $region37: #{xpos_attention_flash_forward.6} parent=31 // pred_check
          %p472 = pneg %p253
        $region38: #{xpos_attention_flash_forward.6} parent=31 // pred_check_branch
          %474 = sbr.rel (%p472) target = $region40
        $region39: #{xpos_attention_flash_forward.6} parent=31 // pred_region
          %v475 = vld [vmem:[#allocation2] sm:$0xff]
          %v476 = vld [vmem:[#allocation2 + $0x8] sm:$0xff]
          %v477 = vld [vmem:[#allocation2 + $0x10] sm:$0xff]
          %v478 = vld [vmem:[#allocation2 + $0x18] sm:$0xff]
          %v479 = vld [vmem:[%s249] sm:$0x3]
          %v480 = vunpack.c.l.bf16 %v479
          %v482 = vperm.slane %v480, 0
          %v483 = vperm.slane %v480, 2
          %v486 = vperm.slane %v482, 0
          %v487 = vperm.slane %v483, 0
          %v488 = vadd.f32 %v475, %v486
          %v489 = vadd.f32 %v476, %v487
          %v490 = vadd.f32 %v477, %v486
          %v491 = vadd.f32 %v478, %v487
          %v492 = vpack.c.bf16 %v489, %v488
          %v493 = vpack.c.bf16 %v491, %v490
          %494 = vst [vmem:[%s227] sm:$0xff] %v492
          %495 = vst [vmem:[%s227 + $0x8] sm:$0xff] %v493
        $region40: #{xpos_attention_flash_forward.6} parent=31 // pred_fallthru
          _
        %s496 = sand.u32 %s125, 1
        %s497 = sand.u32 %s125, 1
        %s498 = smul.addr %s497, 16
        %s499 = scalar_lea.vmem [#allocation3], %s498
        // Predicated region
        $region41: #{xpos_attention_flash_forward.6} parent=31 // pred_check
          %p500 = pneg %p135
        $region42: #{xpos_attention_flash_forward.6} parent=31 // pred_check_branch
          %502 = sbr.rel (%p500) target = $region44
        $region43: #{xpos_attention_flash_forward.6} parent=31 // pred_region
          %s503 = smul.u32 2, %s19
          %s504 = smul.u32 2, %s20
          %s505 = smul.addr %s503, 4
          %s506 = sadd.s32 %s504, %s505
          %s507 = smul.addr %s506, 4
          %s508 = scalar_lea.vmem %s3, %s507
          // Predicated region
          $region45: #{xpos_attention_flash_forward.6} parent=43 // pred_check
            _
          $region46: #{xpos_attention_flash_forward.6} parent=43 // pred_check_branch
            %510 = sbr.rel (0) target = $region48
          $region47: #{xpos_attention_flash_forward.6} parent=43 // pred_region
            // Predicated region
            $region49: #{xpos_attention_flash_forward.6} parent=47 // pred_check
              _
            $region50: #{xpos_attention_flash_forward.6} parent=47 // pred_check_branch
              %512 = sbr.rel (0) target = $region52
            $region51: #{xpos_attention_flash_forward.6} parent=47 // pred_region
              // Predicated region
              $region64: #{xpos_attention_flash_forward.6} parent=51 // pred_check
                _
              $region65: #{xpos_attention_flash_forward.6} parent=51 // pred_check_branch
                %530 = sbr.rel (0) target = $region67
              $region66: #{xpos_attention_flash_forward.6} parent=51 // pred_region
                loop: start=0, step=1, limit=1
                $region68: #{xpos_attention_flash_forward.6} parent=66 // loop_pre_header
                  _
                $region69: #{xpos_attention_flash_forward.6} parent=66 // loop_header
                  %s532 = sphi 0, %s536
                  %p533 = scmp.ge.s32.totalorder %s532, 1
                  %s537 = sphi %s499, %s499
                  %s538 = sphi %s508, %s508
                $region70: #{xpos_attention_flash_forward.6} parent=66 // loop_header_branch
                  %535 = sbr.rel (%p533) target = $region74
                $region71: #{xpos_attention_flash_forward.6} parent=66 // loop_body
                  %v539 = vld [vmem:[%s537] sm:$0xff]
                  %540 = vst [vmem:[%s538] sm:$0xff] %v539
                  %v541 = vld [vmem:[%s537 + $0x8] sm:$0xff]
                  %542 = vst [vmem:[%s538 + $0x10] sm:$0xff] %v541
                $region72: #{xpos_attention_flash_forward.6} parent=66 // loop_footer
                  %s536 = sadd.s32 1, %s532
                $region73: #{xpos_attention_flash_forward.6} parent=66 // loop_footer_branch
                  %531 = sbr.rel target = $region69
                $region74: #{xpos_attention_flash_forward.6} parent=66 // loop_exit
                  _
              $region67: #{xpos_attention_flash_forward.6} parent=51 // pred_fallthru
                _
              // Predicated region
              $region75: #{xpos_attention_flash_forward.6} parent=51 // pred_check
                _
              $region76: #{xpos_attention_flash_forward.6} parent=51 // pred_check_branch
                %544 = sbr.rel target = $region78
              $region77: #{xpos_attention_flash_forward.6} parent=51 // pred_region
                _
              $region78: #{xpos_attention_flash_forward.6} parent=51 // pred_fallthru
                _
            $region52: #{xpos_attention_flash_forward.6} parent=47 // pred_fallthru
              _
            // Predicated region
            $region53: #{xpos_attention_flash_forward.6} parent=47 // pred_check
              _
            $region54: #{xpos_attention_flash_forward.6} parent=47 // pred_check_branch
              %514 = sbr.rel target = $region56
            $region55: #{xpos_attention_flash_forward.6} parent=47 // pred_region
              %s516 = ssub.s32 256, 1
              loop: start=0, step=1, limit=1
              $region57: #{xpos_attention_flash_forward.6} parent=55 // loop_pre_header
                _
              $region58: #{xpos_attention_flash_forward.6} parent=55 // loop_header
                %s518 = sphi 0, %s522
                %p519 = scmp.ge.s32.totalorder %s518, 1
                %s523 = sphi %s499, %s499
                %s524 = sphi %s508, %s508
              $region59: #{xpos_attention_flash_forward.6} parent=55 // loop_header_branch
                %521 = sbr.rel (%p519) target = $region63
              $region60: #{xpos_attention_flash_forward.6} parent=55 // loop_body
                %v525 = vld [vmem:[%s523] sm:%s516]
                %526 = vst [vmem:[%s524] sm:%s516] %v525
                %v527 = vld [vmem:[%s523 + $0x8] sm:%s516]
                %528 = vst [vmem:[%s524 + $0x10] sm:%s516] %v527
              $region61: #{xpos_attention_flash_forward.6} parent=55 // loop_footer
                %s522 = sadd.s32 1, %s518
              $region62: #{xpos_attention_flash_forward.6} parent=55 // loop_footer_branch
                %517 = sbr.rel target = $region58
              $region63: #{xpos_attention_flash_forward.6} parent=55 // loop_exit
                _
            $region56: #{xpos_attention_flash_forward.6} parent=47 // pred_fallthru
              _
          $region48: #{xpos_attention_flash_forward.6} parent=43 // pred_fallthru
            _
          %545 = vnop
        $region44: #{xpos_attention_flash_forward.6} parent=31 // pred_fallthru
          _
      $region32: #{xpos_attention_flash_forward.6} parent=5 // pred_fallthru
        _
      %p546 = scmp.le.s32.totalorder 2, %s9
      // Predicated region
      $region79: #{xpos_attention_flash_forward.6} parent=5 // pred_check
        %p547 = pneg %p546
      $region80: #{xpos_attention_flash_forward.6} parent=5 // pred_check_branch
        %549 = sbr.rel (%p547) target = $region82
      $region81: #{xpos_attention_flash_forward.6} parent=5 // pred_region
        %s550 = ssub.s32 %s9, 2
        // Predicated region
        $region83: #{xpos_attention_flash_forward.6} parent=81 // pred_check
          %p551 = pneg %p141
        $region84: #{xpos_attention_flash_forward.6} parent=81 // pred_check_branch
          %553 = sbr.rel (%p551) target = $region86
        $region85: #{xpos_attention_flash_forward.6} parent=81 // pred_region
          %s554 = sand.u32 %s126, 1
          %s555 = sand.u32 %s126, 1
          %s556 = smul.addr %s555, 16
          %s557 = scalar_lea.vmem [#allocation3], %s556
        $region86: #{xpos_attention_flash_forward.6} parent=81 // pred_fallthru
          _
      $region82: #{xpos_attention_flash_forward.6} parent=5 // pred_fallthru
        _
    $region6: #{xpos_attention_flash_forward.6} parent=1 // loop_footer
      %s13 = sadd.s32 1, %s9
    $region7: #{xpos_attention_flash_forward.6} parent=1 // loop_footer_branch
      %8 = sbr.rel target = $region3
    $region8: #{xpos_attention_flash_forward.6} parent=1 // loop_exit
      _

// kernel: xpos_attention_flash_forward.9
$region0: #{xpos_attention_flash_forward.9}
  #allocation0 [shape = 'u32[]', space=smem, size = 0x4, offset = 0x4, fixed_abs, tag = 'smem constant byte address 0x4 - core index']
  #allocation1 [shape = 'u32[72,128]{1,0:T(1,128)}', space=vmem, size = 0x9000, scoped, tag = 'internal scratch']
  #allocation2 [shape = 'f32[16,32]{1,0:T(8,128)}', space=vmem, size = 0x2000, scoped, tag = 'scratch operand']
  %s0 = inlined_call_operand.vmem [shape: bf16[16,512], index: 0, kind: input, shape index: {}]
  %s1 = inlined_call_operand.vmem [shape: bf16[32,512], index: 1, kind: input, shape index: {}]
  %s2 = inlined_call_operand.vmem [shape: bf16[1,32], index: 2, kind: input, shape index: {}]
  %s3 = inlined_call_operand.hbm [shape: bf16[16,32], index: 3, kind: output, shape index: {}]
  %s4 = sld [smem:[#allocation0]]
  $region30: #{xpos_attention_flash_forward.9} parent=0
    _
  %s6 = ssub.s32 1, %s4
  %s7 = scalar_select 0, %s6, %s4
  $region1: #{xpos_attention_flash_forward.9} parent=0
    #allocation3 [shape = 'u8[4096]{0}', space=vmem, size = 0x1000, scoped, tag = 'output window, operand 0, single buffered']
    #allocation4 [shape = 's32[1]{0}', space=sflag, size = 0x4, scoped, tag = 'scoped memory for xpos_attention_flash_forward.9']
    %8 = vsyncpa [#allocation4], 0
    // Predicated region
    $region2: #{xpos_attention_flash_forward.9} parent=1 // pred_check
      _
    $region3: #{xpos_attention_flash_forward.9} parent=1 // pred_check_branch
      %10 = sbr.rel (0) target = $region5
    $region4: #{xpos_attention_flash_forward.9} parent=1 // pred_region
      _
    $region5: #{xpos_attention_flash_forward.9} parent=1 // pred_fallthru
      _
    // Predicated region
    $region6: #{xpos_attention_flash_forward.9} parent=1 // pred_check
      _
    $region7: #{xpos_attention_flash_forward.9} parent=1 // pred_check_branch
      %12 = sbr.rel (0) target = $region9
    $region8: #{xpos_attention_flash_forward.9} parent=1 // pred_region
      _
    $region9: #{xpos_attention_flash_forward.9} parent=1 // pred_fallthru
      _
    // Predicated region
    $region10: #{xpos_attention_flash_forward.9} parent=1 // pred_check
      _
    $region11: #{xpos_attention_flash_forward.9} parent=1 // pred_check_branch
      %14 = sbr.rel (0) target = $region13
    $region12: #{xpos_attention_flash_forward.9} parent=1 // pred_region
      _
    $region13: #{xpos_attention_flash_forward.9} parent=1 // pred_fallthru
      _
    %p16 = scmp.eq.s32.totalorder 0, 0
    // Predicated region
    $region14: #{xpos_attention_flash_forward.9} parent=1 // pred_check
      %p17 = pneg %p16
    $region15: #{xpos_attention_flash_forward.9} parent=1 // pred_check_branch
      %19 = sbr.rel (%p17) target = $region17
    $region16: #{xpos_attention_flash_forward.9} parent=1 // pred_region
      %vm20 = vcmask 261120
      %21 = vst.msk [vmem:[#allocation2] sm:$0xff] %vm20, 0.0
      %22 = vst.msk [vmem:[#allocation2 + $0x8] sm:$0xff] %vm20, 0.0
    $region17: #{xpos_attention_flash_forward.9} parent=1 // pred_fallthru
      _
    %v23 = vld [vmem:[#allocation2] sm:$0xff]
    %v24 = vld [vmem:[#allocation2 + $0x8] sm:$0xff]
    %v25 = vld [vmem:[%s0] sm:$0xff]
    %v26 = vld [vmem:[%s0 + $0x8] sm:$0xff]
    %v27 = vld [vmem:[%s0 + $0x10] sm:$0xff]
    %v28 = vld [vmem:[%s0 + $0x18] sm:$0xff]
    %v29 = vld [vmem:[%s1] sm:$0xff]
    %v30 = vld [vmem:[%s1 + $0x8] sm:$0xff]
    %v31 = vld [vmem:[%s1 + $0x10] sm:$0xff]
    %v32 = vld [vmem:[%s1 + $0x18] sm:$0xff]
    %v33 = vld [vmem:[%s1 + $0x20] sm:$0xff]
    %v34 = vld [vmem:[%s1 + $0x28] sm:$0xff]
    %v35 = vld [vmem:[%s1 + $0x30] sm:$0xff]
    %v36 = vld [vmem:[%s1 + $0x38] sm:$0xff]
    %v41 = vunpack.c.l.b16 %v25
    %v42 = vunpack.c.h.b16 %v25
    %v43 = vunpack.c.l.b16 %v26
    %v44 = vunpack.c.h.b16 %v26
    %v45 = vunpack.c.l.b16 %v27
    %v46 = vunpack.c.h.b16 %v27
    %v47 = vunpack.c.l.b16 %v28
    %v48 = vunpack.c.h.b16 %v28
    %v49 = vpack.c.b16 %v45, %v41
    %v50 = vpack.c.b16 %v46, %v42
    %v51 = vpack.c.b16 %v47, %v43
    %v52 = vpack.c.b16 %v48, %v44
    %v65 = vunpack.c.l.b16 %v29
    %v66 = vunpack.c.h.b16 %v29
    %v67 = vunpack.c.l.b16 %v30
    %v68 = vunpack.c.h.b16 %v30
    %v69 = vunpack.c.l.b16 %v31
    %v70 = vunpack.c.h.b16 %v31
    %v71 = vunpack.c.l.b16 %v32
    %v72 = vunpack.c.h.b16 %v32
    %v73 = vunpack.c.l.b16 %v33
    %v74 = vunpack.c.h.b16 %v33
    %v75 = vunpack.c.l.b16 %v34
    %v76 = vunpack.c.h.b16 %v34
    %v77 = vunpack.c.l.b16 %v35
    %v78 = vunpack.c.h.b16 %v35
    %v79 = vunpack.c.l.b16 %v36
    %v80 = vunpack.c.h.b16 %v36
    %v81 = vpack.c.b16 %v69, %v65
    %v82 = vpack.c.b16 %v70, %v66
    %v83 = vpack.c.b16 %v71, %v67
    %v84 = vpack.c.b16 %v72, %v68
    %v85 = vpack.c.b16 %v77, %v73
    %v86 = vpack.c.b16 %v78, %v74
    %v87 = vpack.c.b16 %v79, %v75
    %v88 = vpack.c.b16 %v80, %v76
    %97 = vmatpush.bf16.xpose.msra.mxu0 0
    %98 = vmatpush.bf16.xpose.msra.mxu0 0
    %99 = vmatpush.bf16.xpose.msra.mxu0 0
    %100 = vmatpush.bf16.xpose.msra.mxu0 0
    %101 = vmatpush.bf16.xpose.msra.mxu0 0
    %102 = vmatpush.bf16.xpose.msra.mxu0 0
    %103 = vmatpush.bf16.xpose.msra.mxu0 %v85
    %104 = vmatpush.bf16.xpose.msra.mxu0 %v81
    %105 = vmatmul.bf16.gmra.mxu0 %v49
    %v106 = vpop.f32.mrf.mxu0
    %v107 = vadd.f32 0.0, %v106
    %v108 = vpop.f32.mrf.mxu0
    %v109 = vadd.f32 0.0, %v108
    %110 = vdwg.mxu0
    %111 = vmatpush.bf16.xpose.msra.mxu0 0
    %112 = vmatpush.bf16.xpose.msra.mxu0 0
    %113 = vmatpush.bf16.xpose.msra.mxu0 0
    %114 = vmatpush.bf16.xpose.msra.mxu0 0
    %115 = vmatpush.bf16.xpose.msra.mxu0 0
    %116 = vmatpush.bf16.xpose.msra.mxu0 0
    %117 = vmatpush.bf16.xpose.msra.mxu0 %v86
    %118 = vmatpush.bf16.xpose.msra.mxu0 %v82
    %119 = vmatmul.bf16.gmra.mxu0 %v50
    %v120 = vpop.f32.mrf.mxu0
    %v121 = vadd.f32 %v107, %v120
    %v122 = vpop.f32.mrf.mxu0
    %v123 = vadd.f32 %v109, %v122
    %124 = vdwg.mxu0
    %125 = vmatpush.bf16.xpose.msra.mxu0 0
    %126 = vmatpush.bf16.xpose.msra.mxu0 0
    %127 = vmatpush.bf16.xpose.msra.mxu0 0
    %128 = vmatpush.bf16.xpose.msra.mxu0 0
    %129 = vmatpush.bf16.xpose.msra.mxu0 0
    %130 = vmatpush.bf16.xpose.msra.mxu0 0
    %131 = vmatpush.bf16.xpose.msra.mxu0 %v87
    %132 = vmatpush.bf16.xpose.msra.mxu0 %v83
    %133 = vmatmul.bf16.gmra.mxu0 %v51
    %v134 = vpop.f32.mrf.mxu0
    %v135 = vadd.f32 %v121, %v134
    %v136 = vpop.f32.mrf.mxu0
    %v137 = vadd.f32 %v123, %v136
    %138 = vdwg.mxu0
    %139 = vmatpush.bf16.xpose.msra.mxu0 0
    %140 = vmatpush.bf16.xpose.msra.mxu0 0
    %141 = vmatpush.bf16.xpose.msra.mxu0 0
    %142 = vmatpush.bf16.xpose.msra.mxu0 0
    %143 = vmatpush.bf16.xpose.msra.mxu0 0
    %144 = vmatpush.bf16.xpose.msra.mxu0 0
    %145 = vmatpush.bf16.xpose.msra.mxu0 %v88
    %146 = vmatpush.bf16.xpose.msra.mxu0 %v84
    %147 = vmatmul.bf16.gmra.mxu0 %v52
    %v148 = vpop.f32.mrf.mxu0
    %v149 = vadd.f32 %v135, %v148
    %v150 = vpop.f32.mrf.mxu0
    %v151 = vadd.f32 %v137, %v150
    %152 = vdwg.mxu0
    %v153 = vadd.f32 %v23, %v149
    %v154 = vadd.f32 %v24, %v151
    %vm155 = vcmask 261120
    %156 = vst.msk [vmem:[#allocation2] sm:$0xff] %vm155, %v153
    %157 = vst.msk [vmem:[#allocation2 + $0x8] sm:$0xff] %vm155, %v154
    // Predicated region
    $region18: #{xpos_attention_flash_forward.9} parent=1 // pred_check
      %p158 = pneg %p16
    $region19: #{xpos_attention_flash_forward.9} parent=1 // pred_check_branch
      %160 = sbr.rel (%p158) target = $region21
    $region20: #{xpos_attention_flash_forward.9} parent=1 // pred_region
      %v161 = vld [vmem:[#allocation2] sm:$0xff]
      %v162 = vld [vmem:[#allocation2 + $0x8] sm:$0xff]
      %v163 = vld [vmem:[%s2] sm:$0x1]
      %v164 = vunpack.c.l.bf16 %v163
      %v165 = vperm.slane %v164, 0
      %v166 = vadd.f32 %v161, %v165
      %v167 = vadd.f32 %v162, %v165
      %v168 = vpack.c.bf16 %v166, %v166
      %v169 = vpack.c.bf16 %v167, %v167
      %vm170 = vcmask 257024
      %171 = vst.msk [vmem:[#allocation3] sm:$0xf] %vm170, %v168
      %172 = vst.msk [vmem:[#allocation3 + $0x4] sm:$0xf] %vm170, %v169
    $region21: #{xpos_attention_flash_forward.9} parent=1 // pred_fallthru
      _
    // Predicated region
    $region22: #{xpos_attention_flash_forward.9} parent=1 // pred_check
      _
    $region23: #{xpos_attention_flash_forward.9} parent=1 // pred_check_branch
      %174 = sbr.rel (0) target = $region25
    $region24: #{xpos_attention_flash_forward.9} parent=1 // pred_region
      %176 = vsyncadd [#allocation4], 0
      %s177 = sshll.u32 [#allocation3], 4
      %s178 = int_to_ptr.vmem [resolvable:$true] %s177
      %s179 = sshll.u32 %s3, 4
      %s180 = int_to_ptr.hbm [resolvable:$true] %s179
      %185 = dma.vmem_to_hbm [thread:$0]  %s178, 128, %s180, [#allocation4], 64, 64, 4
    $region25: #{xpos_attention_flash_forward.9} parent=1 // pred_fallthru
      _
    // Predicated region
    $region26: #{xpos_attention_flash_forward.9} parent=1 // pred_check
      _
    $region27: #{xpos_attention_flash_forward.9} parent=1 // pred_check_branch
      %187 = sbr.rel (0) target = $region29
    $region28: #{xpos_attention_flash_forward.9} parent=1 // pred_region
      %189 = dma.done [#allocation4], 128
    $region29: #{xpos_attention_flash_forward.9} parent=1 // pred_fallthru
      _
    %190 = vsyncpa [#allocation4], 1

// kernel: xpos_attention_flash_forward.8
$region0: #{xpos_attention_flash_forward.8}
  #allocation0 [shape = 'u32[]', space=smem, size = 0x4, offset = 0x4, fixed_abs, tag = 'smem constant byte address 0x4 - core index']
  #allocation1 [shape = 'u32[72,128]{1,0:T(1,128)}', space=vmem, size = 0x9000, scoped, tag = 'internal scratch']
  #allocation2 [shape = 'bf16[8,128]{1,0:T(8,128)(2,1)}', space=vmem, size = 0x800, scoped, tag = 'scratch operand']
  #allocation3 [shape = 'f32[8,1]{1,0:T(8,128)}', space=vmem, size = 0x1000, scoped, tag = 'scratch operand']
  #allocation4 [shape = 'f32[8,1]{1,0:T(8,128)}', space=vmem, size = 0x1000, scoped, tag = 'scratch operand']
  #allocation5 [shape = 'f32[8,128]{1,0:T(8,128)}', space=vmem, size = 0x1000, scoped, tag = 'scratch operand']
  %s0 = inlined_call_operand.vmem [shape: bf16[2,8,512], index: 0, kind: input, shape index: {}]
  %s1 = inlined_call_operand.vmem [shape: bf16[2,8,512], index: 1, kind: input, shape index: {}]
  %s2 = inlined_call_operand.vmem [shape: bf16[2,8,512], index: 2, kind: input, shape index: {}]
  %s3 = inlined_call_operand.vmem [shape: f32[8,128], index: 3, kind: input, shape index: {}]
  %s4 = inlined_call_operand.vmem [shape: f32[8,128], index: 4, kind: input, shape index: {}]
  %s5 = inlined_call_operand.vmem [shape: bf16[2,8,512], index: 5, kind: output, shape index: {}]
  %s6 = sld [smem:[#allocation0]]
  $region65: #{xpos_attention_flash_forward.8} parent=0
    _
  %s8 = ssub.s32 1, %s6
  %s9 = scalar_select 0, %s8, %s6
  loop: start=0, step=1, limit=10
  $region2: #{xpos_attention_flash_forward.8} parent=0 // loop_pre_header
    _
  $region3: #{xpos_attention_flash_forward.8} parent=0 // loop_header
    %s11 = sphi 0, %s15
    %p12 = scmp.ge.s32.totalorder %s11, 10
    %s18 = sphi 0, %s44
    %s19 = sphi 0, %s40
    %s20 = sphi 0, %s36
    %s21 = sphi 0, %s32
    %s22 = sphi 0, %s18
    %s23 = sphi 0, %s19
    %s24 = sphi 0, %s20
    %s25 = sphi 0, %s21
    %s26 = sphi 0, %s22
    %s27 = sphi 0, %s23
    %s28 = sphi 0, %s24
    %s29 = sphi 0, %s25
    %s51 = sphi 0, %s53
    %s54 = sphi 0, %s51
    %s55 = sphi 0, %s54
    %s71 = sphi 0, %s55
    %s81 = sphi 0, %s83
    %s84 = sphi 0, %s81
    %s85 = sphi 0, %s84
    %s101 = sphi 0, %s85
    %s111 = sphi 0, %s113
    %s114 = sphi 0, %s111
    %s115 = sphi 0, %s114
    %s131 = sphi 0, %s115
    %s137 = sphi 0, %s139
    %s140 = sphi 0, %s137
    %s141 = sphi 0, %s140
    %s157 = sphi 0, %s141
    %s163 = sphi 0, %s165
    %s166 = sphi 0, %s163
    %s167 = sphi 0, %s166
    %s183 = sphi 0, %s167
    %s193 = sphi 0, %s195
    %s196 = sphi 0, %s193
    %s197 = sphi 0, %s196
    %s213 = sphi 0, %s197
  $region4: #{xpos_attention_flash_forward.8} parent=0 // loop_header_branch
    %14 = sbr.rel (%p12) target = $region8
  $region5: #{xpos_attention_flash_forward.8} parent=0 // loop_body
    %s16 = ssub.s32 %s11, 1
    %s17 = ssub.s32 %s11, 2
    %s30 = sadd.s32 1, %s21
    %p31 = scmp.ge.s32.totalorder %s30, 1
    %s32 = scalar_select %p31, 0, %s30
    %s33 = sadd.s32 1, %s20
    %s34 = scalar_select %p31, %s33, %s20
    %p35 = scmp.ge.s32.totalorder %s34, 1
    %s36 = scalar_select %p35, 0, %s34
    %s37 = sadd.s32 1, %s19
    %s38 = scalar_select %p35, %s37, %s19
    %p39 = scmp.ge.s32.totalorder %s38, 4
    %s40 = scalar_select %p39, 0, %s38
    %s41 = sadd.s32 1, %s18
    %s42 = scalar_select %p39, %s41, %s18
    %p43 = scmp.ge.s32.totalorder %s42, 2
    %s44 = scalar_select %p43, 0, %s42
    %s45 = ssub.s32 %s18, %s44
    %s46 = ssub.s32 %s20, %s36
    %s47 = sor.u32 %s45, %s46
    %s48 = ssub.s32 %s19, %s40
    %s49 = sor.u32 %s47, %s48
    %p50 = scmp.eq.s32.totalorder %s49, 0
    %s52 = sadd.s32 %s51, 1
    %s53 = scalar_select %p50, %s51, %s52
    %p56 = pneg %p50
    %p57 = scmp.eq.s32.totalorder %s11, 7
    %p58 = por %p56, %p57
    %p59 = scmp.ne.s32.totalorder %s51, %s54
    %p60 = scmp.eq.s32.totalorder %s11, 0
    %p61 = por %p59, %p60
    %p62 = scmp.ne.s32.totalorder %s51, %s54
    %p63 = scmp.eq.s32.totalorder %s16, 7
    %p64 = por %p62, %p63
    %p65 = scmp.ne.s32.totalorder %s54, %s55
    %p66 = scmp.eq.s32.totalorder %s16, 0
    %p67 = por %p65, %p66
    %p68 = scmp.ne.s32.totalorder %s54, %s55
    %p69 = scmp.eq.s32.totalorder %s17, 7
    %p70 = por %p68, %p69
    %p72 = scmp.ne.s32.totalorder %s55, %s71
    %p73 = scmp.eq.s32.totalorder %s17, 0
    %p74 = por %p72, %p73
    %s75 = ssub.s32 %s18, %s44
    %s76 = ssub.s32 %s21, %s32
    %s77 = sor.u32 %s75, %s76
    %s78 = ssub.s32 %s19, %s40
    %s79 = sor.u32 %s77, %s78
    %p80 = scmp.eq.s32.totalorder %s79, 0
    %s82 = sadd.s32 %s81, 1
    %s83 = scalar_select %p80, %s81, %s82
    %p86 = pneg %p80
    %p87 = scmp.eq.s32.totalorder %s11, 7
    %p88 = por %p86, %p87
    %p89 = scmp.ne.s32.totalorder %s81, %s84
    %p90 = scmp.eq.s32.totalorder %s11, 0
    %p91 = por %p89, %p90
    %p92 = scmp.ne.s32.totalorder %s81, %s84
    %p93 = scmp.eq.s32.totalorder %s16, 7
    %p94 = por %p92, %p93
    %p95 = scmp.ne.s32.totalorder %s84, %s85
    %p96 = scmp.eq.s32.totalorder %s16, 0
    %p97 = por %p95, %p96
    %p98 = scmp.ne.s32.totalorder %s84, %s85
    %p99 = scmp.eq.s32.totalorder %s17, 7
    %p100 = por %p98, %p99
    %p102 = scmp.ne.s32.totalorder %s85, %s101
    %p103 = scmp.eq.s32.totalorder %s17, 0
    %p104 = por %p102, %p103
    %s105 = ssub.s32 %s18, %s44
    %s106 = ssub.s32 %s21, %s32
    %s107 = sor.u32 %s105, %s106
    %s108 = ssub.s32 %s19, %s40
    %s109 = sor.u32 %s107, %s108
    %p110 = scmp.eq.s32.totalorder %s109, 0
    %s112 = sadd.s32 %s111, 1
    %s113 = scalar_select %p110, %s111, %s112
    %p116 = pneg %p110
    %p117 = scmp.eq.s32.totalorder %s11, 7
    %p118 = por %p116, %p117
    %p119 = scmp.ne.s32.totalorder %s111, %s114
    %p120 = scmp.eq.s32.totalorder %s11, 0
    %p121 = por %p119, %p120
    %p122 = scmp.ne.s32.totalorder %s111, %s114
    %p123 = scmp.eq.s32.totalorder %s16, 7
    %p124 = por %p122, %p123
    %p125 = scmp.ne.s32.totalorder %s114, %s115
    %p126 = scmp.eq.s32.totalorder %s16, 0
    %p127 = por %p125, %p126
    %p128 = scmp.ne.s32.totalorder %s114, %s115
    %p129 = scmp.eq.s32.totalorder %s17, 7
    %p130 = por %p128, %p129
    %p132 = scmp.ne.s32.totalorder %s115, %s131
    %p133 = scmp.eq.s32.totalorder %s17, 0
    %p134 = por %p132, %p133
    %s135 = ssub.s32 %s20, %s36
    %p136 = scmp.eq.s32.totalorder %s135, 0
    %s138 = sadd.s32 %s137, 1
    %s139 = scalar_select %p136, %s137, %s138
    %p142 = pneg %p136
    %p143 = scmp.eq.s32.totalorder %s11, 7
    %p144 = por %p142, %p143
    %p145 = scmp.ne.s32.totalorder %s137, %s140
    %p146 = scmp.eq.s32.totalorder %s11, 0
    %p147 = por %p145, %p146
    %p148 = scmp.ne.s32.totalorder %s137, %s140
    %p149 = scmp.eq.s32.totalorder %s16, 7
    %p150 = por %p148, %p149
    %p151 = scmp.ne.s32.totalorder %s140, %s141
    %p152 = scmp.eq.s32.totalorder %s16, 0
    %p153 = por %p151, %p152
    %p154 = scmp.ne.s32.totalorder %s140, %s141
    %p155 = scmp.eq.s32.totalorder %s17, 7
    %p156 = por %p154, %p155
    %p158 = scmp.ne.s32.totalorder %s141, %s157
    %p159 = scmp.eq.s32.totalorder %s17, 0
    %p160 = por %p158, %p159
    %s161 = ssub.s32 %s20, %s36
    %p162 = scmp.eq.s32.totalorder %s161, 0
    %s164 = sadd.s32 %s163, 1
    %s165 = scalar_select %p162, %s163, %s164
    %p168 = pneg %p162
    %p169 = scmp.eq.s32.totalorder %s11, 7
    %p170 = por %p168, %p169
    %p171 = scmp.ne.s32.totalorder %s163, %s166
    %p172 = scmp.eq.s32.totalorder %s11, 0
    %p173 = por %p171, %p172
    %p174 = scmp.ne.s32.totalorder %s163, %s166
    %p175 = scmp.eq.s32.totalorder %s16, 7
    %p176 = por %p174, %p175
    %p177 = scmp.ne.s32.totalorder %s166, %s167
    %p178 = scmp.eq.s32.totalorder %s16, 0
    %p179 = por %p177, %p178
    %p180 = scmp.ne.s32.totalorder %s166, %s167
    %p181 = scmp.eq.s32.totalorder %s17, 7
    %p182 = por %p180, %p181
    %p184 = scmp.ne.s32.totalorder %s167, %s183
    %p185 = scmp.eq.s32.totalorder %s17, 0
    %p186 = por %p184, %p185
    %s187 = ssub.s32 %s18, %s44
    %s188 = ssub.s32 %s20, %s36
    %s189 = sor.u32 %s187, %s188
    %s190 = ssub.s32 %s19, %s40
    %s191 = sor.u32 %s189, %s190
    %p192 = scmp.eq.s32.totalorder %s191, 0
    %s194 = sadd.s32 %s193, 1
    %s195 = scalar_select %p192, %s193, %s194
    %p198 = pneg %p192
    %p199 = scmp.eq.s32.totalorder %s11, 7
    %p200 = por %p198, %p199
    %p201 = scmp.ne.s32.totalorder %s193, %s196
    %p202 = scmp.eq.s32.totalorder %s11, 0
    %p203 = por %p201, %p202
    %p204 = scmp.ne.s32.totalorder %s193, %s196
    %p205 = scmp.eq.s32.totalorder %s16, 7
    %p206 = por %p204, %p205
    %p207 = scmp.ne.s32.totalorder %s196, %s197
    %p208 = scmp.eq.s32.totalorder %s16, 0
    %p209 = por %p207, %p208
    %p210 = scmp.ne.s32.totalorder %s196, %s197
    %p211 = scmp.eq.s32.totalorder %s17, 7
    %p212 = por %p210, %p211
    %p214 = scmp.ne.s32.totalorder %s197, %s213
    %p215 = scmp.eq.s32.totalorder %s17, 0
    %p216 = por %p214, %p215
    %p217 = scmp.le.s32.totalorder 1, %s11
    %p218 = scmp.lt.s32.totalorder %s11, 9
    %p219 = pnand %p217, %p218
    %p220 = pneg %p219
    // Predicated region
    $region9: #{xpos_attention_flash_forward.8} parent=5 // pred_check
      _
    $region10: #{xpos_attention_flash_forward.8} parent=5 // pred_check_branch
      %222 = sbr.rel (%p219) target = $region12
    $region11: #{xpos_attention_flash_forward.8} parent=5 // pred_region
      %s223 = ssub.s32 %s11, 1
      // Predicated region
      $region13: #{xpos_attention_flash_forward.8} parent=11 // pred_check
        %p224 = pneg %p153
      $region14: #{xpos_attention_flash_forward.8} parent=11 // pred_check_branch
        %226 = sbr.rel (%p224) target = $region16
      $region15: #{xpos_attention_flash_forward.8} parent=11 // pred_region
        %p227 = scmp.lt.s32.totalorder %s24, 0
        %s228 = scalar_select %p227, %s24, 0
        %s229 = smul.addr %s228, 8
        %s230 = scalar_lea.vmem %s3, %s229
      $region16: #{xpos_attention_flash_forward.8} parent=11 // pred_fallthru
        _
      // Predicated region
      $region17: #{xpos_attention_flash_forward.8} parent=11 // pred_check
        %p231 = pneg %p179
      $region18: #{xpos_attention_flash_forward.8} parent=11 // pred_check_branch
        %233 = sbr.rel (%p231) target = $region20
      $region19: #{xpos_attention_flash_forward.8} parent=11 // pred_region
        %p234 = scmp.lt.s32.totalorder %s24, 0
        %s235 = scalar_select %p234, %s24, 0
        %s236 = smul.addr %s235, 8
        %s237 = scalar_lea.vmem %s4, %s236
      $region20: #{xpos_attention_flash_forward.8} parent=11 // pred_fallthru
        _
    $region12: #{xpos_attention_flash_forward.8} parent=5 // pred_fallthru
      _
    %p238 = scmp.lt.s32.totalorder %s11, 8
    // Predicated region
    $region21: #{xpos_attention_flash_forward.8} parent=5 // pred_check
      %p239 = pneg %p238
    $region22: #{xpos_attention_flash_forward.8} parent=5 // pred_check_branch
      %241 = sbr.rel (%p239) target = $region24
    $region23: #{xpos_attention_flash_forward.8} parent=5 // pred_region
      // Predicated region
      $region25: #{xpos_attention_flash_forward.8} parent=23 // pred_check
        %p242 = pneg %p61
      $region26: #{xpos_attention_flash_forward.8} parent=23 // pred_check_branch
        %244 = sbr.rel (%p242) target = $region28
      $region27: #{xpos_attention_flash_forward.8} parent=23 // pred_region
        %p245 = scmp.lt.s32.totalorder %s18, 1
        %s246 = scalar_select %p245, %s18, 1
        %p247 = scmp.lt.s32.totalorder %s20, 0
        %s248 = scalar_select %p247, %s20, 0
        %p249 = scmp.lt.s32.totalorder %s19, 3
        %s250 = scalar_select %p249, %s19, 3
        %s251 = smul.addr %s248, 4
        %s252 = sadd.s32 %s250, %s251
        %s253 = smul.addr %s246, 4
        %s254 = sadd.s32 %s252, %s253
        %s255 = smul.addr %s254, 4
        %s256 = scalar_lea.vmem %s0, %s255
      $region28: #{xpos_attention_flash_forward.8} parent=23 // pred_fallthru
        _
      // Predicated region
      $region29: #{xpos_attention_flash_forward.8} parent=23 // pred_check
        %p257 = pneg %p91
      $region30: #{xpos_attention_flash_forward.8} parent=23 // pred_check_branch
        %259 = sbr.rel (%p257) target = $region32
      $region31: #{xpos_attention_flash_forward.8} parent=23 // pred_region
        %p260 = scmp.lt.s32.totalorder %s18, 1
        %s261 = scalar_select %p260, %s18, 1
        %p262 = scmp.lt.s32.totalorder %s21, 0
        %s263 = scalar_select %p262, %s21, 0
        %p264 = scmp.lt.s32.totalorder %s19, 3
        %s265 = scalar_select %p264, %s19, 3
        %s266 = smul.addr %s263, 4
        %s267 = sadd.s32 %s265, %s266
        %s268 = smul.addr %s261, 4
        %s269 = sadd.s32 %s267, %s268
        %s270 = smul.addr %s269, 4
        %s271 = scalar_lea.vmem %s1, %s270
      $region32: #{xpos_attention_flash_forward.8} parent=23 // pred_fallthru
        _
      // Predicated region
      $region33: #{xpos_attention_flash_forward.8} parent=23 // pred_check
        %p272 = pneg %p121
      $region34: #{xpos_attention_flash_forward.8} parent=23 // pred_check_branch
        %274 = sbr.rel (%p272) target = $region36
      $region35: #{xpos_attention_flash_forward.8} parent=23 // pred_region
        %p275 = scmp.lt.s32.totalorder %s18, 1
        %s276 = scalar_select %p275, %s18, 1
        %p277 = scmp.lt.s32.totalorder %s21, 0
        %s278 = scalar_select %p277, %s21, 0
        %p279 = scmp.lt.s32.totalorder %s19, 3
        %s280 = scalar_select %p279, %s19, 3
        %s281 = smul.addr %s278, 4
        %s282 = sadd.s32 %s280, %s281
        %s283 = smul.addr %s276, 4
        %s284 = sadd.s32 %s282, %s283
        %s285 = smul.addr %s284, 4
        %s286 = scalar_lea.vmem %s2, %s285
      $region36: #{xpos_attention_flash_forward.8} parent=23 // pred_fallthru
        _
    $region24: #{xpos_attention_flash_forward.8} parent=5 // pred_fallthru
      _
    %p287 = scmp.le.s32.totalorder 1, %s11
    %p288 = scmp.lt.s32.totalorder %s11, 9
    %p289 = pnand %p287, %p288
    %p290 = pneg %p289
    // Predicated region
    $region37: #{xpos_attention_flash_forward.8} parent=5 // pred_check
      _
    $region38: #{xpos_attention_flash_forward.8} parent=5 // pred_check_branch
      %292 = sbr.rel (%p289) target = $region40
    $region39: #{xpos_attention_flash_forward.8} parent=5 // pred_region
      %s293 = ssub.s32 %s11, 1
      %p294 = scmp.lt.s32.totalorder %s22, 1
      %s295 = scalar_select %p294, %s22, 1
      %p296 = scmp.lt.s32.totalorder %s24, 0
      %s297 = scalar_select %p296, %s24, 0
      %p298 = scmp.lt.s32.totalorder %s23, 3
      %s299 = scalar_select %p298, %s23, 3
      %s300 = smul.addr %s297, 4
      %s301 = sadd.s32 %s299, %s300
      %s302 = smul.addr %s295, 4
      %s303 = sadd.s32 %s301, %s302
      %s304 = smul.addr %s303, 4
      %s305 = scalar_lea.vmem %s0, %s304
      %p306 = pneg %p67
      %p307 = pneg %p64
      %p308 = scmp.lt.s32.totalorder %s22, 1
      %s309 = scalar_select %p308, %s22, 1
      %p310 = scmp.lt.s32.totalorder %s25, 0
      %s311 = scalar_select %p310, %s25, 0
      %p312 = scmp.lt.s32.totalorder %s23, 3
      %s313 = scalar_select %p312, %s23, 3
      %s314 = smul.addr %s311, 4
      %s315 = sadd.s32 %s313, %s314
      %s316 = smul.addr %s309, 4
      %s317 = sadd.s32 %s315, %s316
      %s318 = smul.addr %s317, 4
      %s319 = scalar_lea.vmem %s1, %s318
      %p320 = pneg %p97
      %p321 = pneg %p94
      %p322 = scmp.lt.s32.totalorder %s22, 1
      %s323 = scalar_select %p322, %s22, 1
      %p324 = scmp.lt.s32.totalorder %s25, 0
      %s325 = scalar_select %p324, %s25, 0
      %p326 = scmp.lt.s32.totalorder %s23, 3
      %s327 = scalar_select %p326, %s23, 3
      %s328 = smul.addr %s325, 4
      %s329 = sadd.s32 %s327, %s328
      %s330 = smul.addr %s323, 4
      %s331 = sadd.s32 %s329, %s330
      %s332 = smul.addr %s331, 4
      %s333 = scalar_lea.vmem %s2, %s332
      %p334 = pneg %p127
      %p335 = pneg %p124
      %p336 = scmp.lt.s32.totalorder %s24, 0
      %s337 = scalar_select %p336, %s24, 0
      %s338 = smul.addr %s337, 8
      %s339 = scalar_lea.vmem %s3, %s338
      %p340 = pneg %p153
      %p341 = pneg %p150
      %p342 = scmp.lt.s32.totalorder %s24, 0
      %s343 = scalar_select %p342, %s24, 0
      %s344 = smul.addr %s343, 8
      %s345 = scalar_lea.vmem %s4, %s344
      %p346 = pneg %p179
      %p347 = pneg %p176
      %p348 = pneg %p209
      %p349 = pneg %p206
      %p350 = scmp.lt.s32.totalorder %s22, 1
      %s351 = scalar_select %p350, %s22, 1
      %p352 = scmp.lt.s32.totalorder %s24, 0
      %s353 = scalar_select %p352, %s24, 0
      %p354 = scmp.lt.s32.totalorder %s23, 3
      %s355 = scalar_select %p354, %s23, 3
      %s356 = smul.addr %s353, 4
      %s357 = sadd.s32 %s355, %s356
      %s358 = smul.addr %s351, 4
      %s359 = sadd.s32 %s357, %s358
      %s360 = smul.addr %s359, 4
      %s361 = scalar_lea.vmem %s5, %s360
      %p362 = scmp.lt.s32.totalorder %s22, 1
      %s363 = scalar_select %p362, %s22, 1
      %p364 = scmp.lt.s32.totalorder %s24, 0
      %s365 = scalar_select %p364, %s24, 0
      %p366 = scmp.lt.s32.totalorder %s23, 3
      %s367 = scalar_select %p366, %s23, 3
      %s368 = smul.addr %s365, 4
      %s369 = sadd.s32 %s367, %s368
      %s370 = smul.addr %s363, 4
      %s371 = sadd.s32 %s369, %s370
      %s372 = smul.addr %s371, 4
      %s373 = scalar_lea.vmem %s0, %s372
      %p374 = scmp.lt.s32.totalorder %s22, 1
      %s375 = scalar_select %p374, %s22, 1
      %p376 = scmp.lt.s32.totalorder %s25, 0
      %s377 = scalar_select %p376, %s25, 0
      %p378 = scmp.lt.s32.totalorder %s23, 3
      %s379 = scalar_select %p378, %s23, 3
      %s380 = smul.addr %s377, 4
      %s381 = sadd.s32 %s379, %s380
      %s382 = smul.addr %s375, 4
      %s383 = sadd.s32 %s381, %s382
      %s384 = smul.addr %s383, 4
      %s385 = scalar_lea.vmem %s1, %s384
      %p386 = scmp.lt.s32.totalorder %s22, 1
      %s387 = scalar_select %p386, %s22, 1
      %p388 = scmp.lt.s32.totalorder %s25, 0
      %s389 = scalar_select %p388, %s25, 0
      %p390 = scmp.lt.s32.totalorder %s23, 3
      %s391 = scalar_select %p390, %s23, 3
      %s392 = smul.addr %s389, 4
      %s393 = sadd.s32 %s391, %s392
      %s394 = smul.addr %s387, 4
      %s395 = sadd.s32 %s393, %s394
      %s396 = smul.addr %s395, 4
      %s397 = scalar_lea.vmem %s2, %s396
      %p398 = scmp.lt.s32.totalorder %s24, 0
      %s399 = scalar_select %p398, %s24, 0
      %s400 = smul.addr %s399, 8
      %s401 = scalar_lea.vmem %s3, %s400
      %p402 = scmp.lt.s32.totalorder %s24, 0
      %s403 = scalar_select %p402, %s24, 0
      %s404 = smul.addr %s403, 8
      %s405 = scalar_lea.vmem %s4, %s404
      %p406 = scmp.lt.s32.totalorder %s22, 1
      %s407 = scalar_select %p406, %s22, 1
      %p408 = scmp.lt.s32.totalorder %s24, 0
      %s409 = scalar_select %p408, %s24, 0
      %p410 = scmp.lt.s32.totalorder %s23, 3
      %s411 = scalar_select %p410, %s23, 3
      %s412 = smul.addr %s409, 4
      %s413 = sadd.s32 %s411, %s412
      %s414 = smul.addr %s407, 4
      %s415 = sadd.s32 %s413, %s414
      %s416 = smul.addr %s415, 4
      %s417 = scalar_lea.vmem %s5, %s416
      %p419 = scmp.eq.s32.totalorder %s25, 0
      // Predicated region
      $region41: #{xpos_attention_flash_forward.8} parent=39 // pred_check
        %p420 = pneg %p419
      $region42: #{xpos_attention_flash_forward.8} parent=39 // pred_check_branch
        %422 = sbr.rel (%p420) target = $region44
      $region43: #{xpos_attention_flash_forward.8} parent=39 // pred_region
        %v423 = vld [vmem:[%s373] sm:$0xf]
        %v424 = vunpack.c.l.bf16 %v423
        %v425 = vld [vmem:[%s401] sm:$0xff]
        %v426 = vmul.f32 %v424, %v425
        %427 = vrot.lane.b32.xlu0 %v424, 127
        %v428 = vpop.permute.xlu0 %427
        %429 = vrot.lane.b32.xlu0 %v424, 1
        %v430 = vpop.permute.xlu0 %429
        %v431 = vlaneseq
        %v432 = vand.u32 %v431, 127
        %vm433 = vcmp.lt.s32.totalorder %v432, 0
        %v434 = vsub.s32 0, %v432
        %v435 = vsel %vm433, %v434, %v432
        %v436 = vshrl.u32 %v435, 1
        %v437 = vand.u32 %v435, 1
        %v438 = vsub.s32 0, %v437
        %v439 = vsel %vm433, %v438, %v437
        %vm440 = vcmp.ne.s32.totalorder %v439, 0
        %vm441 = vcmp.lt.s32.totalorder %v439, 0
        %vm442 = vmand %vm441, %vm440
        %v443 = vadd.s32 %v439, 2
        %v444 = vsel %vm442, %v443, %v439
        %vm445 = vcmp.eq.s32.totalorder %v444, 0
        %v446 = vsub.f32 0.0, %v428
        %v447 = vsel %vm445, %v446, %v430
        %v448 = vld [vmem:[%s405] sm:$0xff]
        %v449 = vmul.f32 %v447, %v448
        %v450 = vadd.f32 %v426, %v449
        %v451 = vpack.c.bf16 %v450, %v450
        %452 = vst [vmem:[#allocation2] sm:$0xf] %v451
        %vm453 = vcmask 7168
        %454 = vst.msk [vmem:[#allocation3] sm:$0xff] %vm453, -1e+30
        %455 = vst.msk [vmem:[#allocation4] sm:$0xff] %vm453, 0.0
        %456 = vst [vmem:[#allocation5] sm:$0xff] 0.0
      $region44: #{xpos_attention_flash_forward.8} parent=39 // pred_fallthru
        _
      %s457 = smul.u32 %s24, 8
      %s458 = sadd.s32 %s457, 7
      %s459 = smul.u32 %s25, 8
      %p460 = scmp.ge.s32.totalorder %s458, %s459
      // Predicated region
      $region45: #{xpos_attention_flash_forward.8} parent=39 // pred_check
        %p461 = pneg %p460
      $region46: #{xpos_attention_flash_forward.8} parent=39 // pred_check_branch
        %463 = sbr.rel (%p461) target = $region48
      $region47: #{xpos_attention_flash_forward.8} parent=39 // pred_region
        %v464 = vld [vmem:[%s385] sm:$0xf]
        %v465 = vld [vmem:[#allocation2] sm:$0xf]
        %466 = vmatpush.bf16.xpose.msra.mxu0 0
        %467 = vmatpush.bf16.xpose.msra.mxu0 0
        %468 = vmatpush.bf16.xpose.msra.mxu0 0
        %469 = vmatpush.bf16.xpose.msra.mxu0 0
        %470 = vmatpush.bf16.xpose.msra.mxu0 0
        %471 = vmatpush.bf16.xpose.msra.mxu0 0
        %472 = vmatpush.bf16.xpose.msra.mxu0 0
        %473 = vmatpush.bf16.xpose.msra.mxu0 %v464
        %474 = vmatmul.bf16.gmra.mxu0 %v465
        %v475 = vpop.f32.mrf.mxu0
        %v476 = vadd.f32 0.0, %v475
        %v477 = vpop.f32.mrf.mxu0
        %478 = vdwg.mxu0
        %v479 = vmul.f32 %v476, 0.35355338
        %v480 = vlaneseq
        %v481 = vshrl.u32 %v480, 7
        %v482 = vstv %s457
        %v483 = vadd.s32 %v482, %v481
        %v484 = vlaneseq
        %v485 = vand.u32 %v484, 127
        %v486 = vstv %s459
        %v487 = vadd.s32 %v486, %v485
        %vm488 = vcmp.ge.s32.totalorder %v483, %v487
        %v489 = vsel %vm488, %v479, -1e+30
        %v490 = vld [vmem:[#allocation3] sm:$0xff]
        %vm491 = vcmask 64512
        %v492 = vsel %vm491, %v489, -inf
        %493 = vmax.xlane.f32.xlu0 %v492
        %v494 = vpop.xlane.xlu0 %493
        %v495 = vmax.f32 %v490, %v494
        %v496 = vsub.f32 %v490, %v495
        %v497 = vmul.f32 %v496, 1.442695
        %v498 = vpow.pop %v497
        %500 = vset.pattern.permute.xlu0 0
        %501 = vperm.xlu0 %500, %v495
        %v502 = vpop.permute.xlu0 %501
        %v504 = vsub.f32 %v489, %v502
        %v505 = vmul.f32 %v504, 1.442695
        %v506 = vpow.pop %v505
        %v507 = vld [vmem:[#allocation4] sm:$0xff]
        %v508 = vmul.f32 %v498, %v507
        %v509 = vsel %vm491, %v506, 0.0
        %510 = vadd.xlane.f32.xlu0 %v509
        %v511 = vpop.xlane.xlu0 %510
        %v512 = vadd.f32 %v508, %v511
        %vm513 = vcmask 7168
        %514 = vst.msk [vmem:[#allocation4] sm:$0xff] %vm513, %v512
        %v515 = vld [vmem:[#allocation5] sm:$0xff]
        %517 = vset.pattern.permute.xlu0 0
        %518 = vperm.xlu0 %517, %v498
        %v519 = vpop.permute.xlu0 %518
        %v521 = vmul.f32 %v519, %v515
        %v522 = vpack.c.bf16 %v506, %v506
        %v523 = vld [vmem:[%s397] sm:$0xf]
        %v525 = vsel %vm491, %v522, 0
        %vm527 = vcmask 1043456
        %v529 = vsel %vm527, %v523, 0
        %531 = vmatpush.bf16.msra.mxu0 0
        %532 = vmatpush.bf16.msra.mxu0 0
        %533 = vmatpush.bf16.msra.mxu0 0
        %534 = vmatpush.bf16.msra.mxu0 0
        %535 = vmatpush.bf16.msra.mxu0 0
        %536 = vmatpush.bf16.msra.mxu0 0
        %537 = vmatpush.bf16.msra.mxu0 0
        %538 = vmatpush.bf16.msra.mxu0 %v529
        %539 = vmatmul.bf16.gmra.mxu0 %v525
        %v540 = vpop.f32.mrf.mxu0
        %v541 = vadd.f32 0.0, %v540
        %v542 = vpop.f32.mrf.mxu0
        %543 = vdwg.mxu0
        %v544 = vadd.f32 %v521, %v541
        %545 = vst [vmem:[#allocation5] sm:$0xff] %v544
        %546 = vst.msk [vmem:[#allocation3] sm:$0xff] %vm513, %v495
      $region48: #{xpos_attention_flash_forward.8} parent=39 // pred_fallthru
        _
      // Predicated region
      $region49: #{xpos_attention_flash_forward.8} parent=39 // pred_check
        %p547 = pneg %p419
      $region50: #{xpos_attention_flash_forward.8} parent=39 // pred_check_branch
        %549 = sbr.rel (%p547) target = $region52
      $region51: #{xpos_attention_flash_forward.8} parent=39 // pred_region
        %v550 = vld [vmem:[#allocation4] sm:$0xff]
        %v551 = vrcp.pop %v550
        %v552 = vld [vmem:[#allocation5] sm:$0xff]
        %554 = vset.pattern.permute.xlu0 0
        %555 = vperm.xlu0 %554, %v551
        %v556 = vpop.permute.xlu0 %555
        %v558 = vmul.f32 %v552, %v556
        %v559 = vpack.c.bf16 %v558, %v558
        %560 = vst [vmem:[%s417] sm:$0xf] %v559
      $region52: #{xpos_attention_flash_forward.8} parent=39 // pred_fallthru
        _
      %p561 = scmp.lt.s32.totalorder %s22, 1
      %s562 = scalar_select %p561, %s22, 1
      %p563 = scmp.lt.s32.totalorder %s24, 0
      %s564 = scalar_select %p563, %s24, 0
      %p565 = scmp.lt.s32.totalorder %s23, 3
      %s566 = scalar_select %p565, %s23, 3
      %s567 = smul.addr %s564, 4
      %s568 = sadd.s32 %s566, %s567
      %s569 = smul.addr %s562, 4
      %s570 = sadd.s32 %s568, %s569
      %s571 = smul.addr %s570, 4
      %s572 = scalar_lea.vmem %s5, %s571
      // Predicated region
      $region53: #{xpos_attention_flash_forward.8} parent=39 // pred_check
        %p573 = pneg %p206
      $region54: #{xpos_attention_flash_forward.8} parent=39 // pred_check_branch
        %575 = sbr.rel (%p573) target = $region56
      $region55: #{xpos_attention_flash_forward.8} parent=39 // pred_region
        _
      $region56: #{xpos_attention_flash_forward.8} parent=39 // pred_fallthru
        _
    $region40: #{xpos_attention_flash_forward.8} parent=5 // pred_fallthru
      _
    %p576 = scmp.le.s32.totalorder 2, %s11
    // Predicated region
    $region57: #{xpos_attention_flash_forward.8} parent=5 // pred_check
      %p577 = pneg %p576
    $region58: #{xpos_attention_flash_forward.8} parent=5 // pred_check_branch
      %579 = sbr.rel (%p577) target = $region60
    $region59: #{xpos_attention_flash_forward.8} parent=5 // pred_region
      %s580 = ssub.s32 %s11, 2
      // Predicated region
      $region61: #{xpos_attention_flash_forward.8} parent=59 // pred_check
        %p581 = pneg %p212
      $region62: #{xpos_attention_flash_forward.8} parent=59 // pred_check_branch
        %583 = sbr.rel (%p581) target = $region64
      $region63: #{xpos_attention_flash_forward.8} parent=59 // pred_region
        %p584 = scmp.lt.s32.totalorder %s26, 1
        %s585 = scalar_select %p584, %s26, 1
        %p586 = scmp.lt.s32.totalorder %s28, 0
        %s587 = scalar_select %p586, %s28, 0
        %p588 = scmp.lt.s32.totalorder %s27, 3
        %s589 = scalar_select %p588, %s27, 3
        %s590 = smul.addr %s587, 4
        %s591 = sadd.s32 %s589, %s590
        %s592 = smul.addr %s585, 4
        %s593 = sadd.s32 %s591, %s592
        %s594 = smul.addr %s593, 4
        %s595 = scalar_lea.vmem %s5, %s594
      $region64: #{xpos_attention_flash_forward.8} parent=59 // pred_fallthru
        _
    $region60: #{xpos_attention_flash_forward.8} parent=5 // pred_fallthru
      _
  $region6: #{xpos_attention_flash_forward.8} parent=0 // loop_footer
    %s15 = sadd.s32 1, %s11
  $region7: #{xpos_attention_flash_forward.8} parent=0 // loop_footer_branch
    %10 = sbr.rel target = $region3
  $region8: #{xpos_attention_flash_forward.8} parent=0 // loop_exit
    _

</llo_original>
